<compile_context>
chip_gen: v5e
topology: v5e:2x2
jax: 0.10.0
libtpu: 0.0.40
codegen_flags: <defaults>
</compile_context>

<pallas_src>
import functools
import math

import numpy as np
import jax
import jax.numpy as jnp
from jax import lax
from jax.experimental import pallas as pl
from jax.experimental.pallas import tpu as pltpu


def _convgru_kernel(xp_ref, h_ref, mask_ref, wx_ref, wgh_ref, wch_ref,
                    out_ref, xcol_ref, hcol_ref, *, W, K, CH, CP, LW):
    """One batch-group: xp/h are (CP/CH, LW) slabs with LW = NB*H*W lanes."""
    P = K // 2

    xp = xp_ref[0]           # (CP, LW)  x channels + ones (bias) row + zero pad
    h = h_ref[0]             # (CH, LW)  hidden state
    masks = mask_ref[...]    # (K*K, LW) multiplicative 0/1 boundary masks

    # Tap (dy, dx) reads pixel (y+dy-P, x+dx-P) == lane l + off with
    # off = (dy-P)*W + (dx-P).  roll semantics (out[i] = in[i - shift]) give
    # shift = (-off) mod LW.  Cross-image / out-of-image lanes of the circular
    # rotate are zeroed by the mask.
    shifts = [(-((dy - P) * W + (dx - P))) % LW
              for dy in range(K) for dx in range(K)]

    def rot(img, s):
        return img if s == 0 else pltpu.roll(img, shift=s, axis=1)

    # Stage both im2col matrices into VMEM scratch (tap-major, channel-minor),
    # tile-aligned 8-row blocks per tap.
    for t, s in enumerate(shifts):
        m = masks[t:t + 1, :]                                    # (1, LW)
        xcol_ref[t * CP:(t + 1) * CP, :] = rot(xp, s) * m
        hcol_ref[t * CH:(t + 1) * CH, :] = rot(h, s) * m

    # One fused GEMM for the x contribution of BOTH convolutions; biases are
    # folded into the centre-tap ones row, so no separate bias operands.
    x3 = jnp.dot(wx_ref[...], xcol_ref[...],
                 preferred_element_type=jnp.float32)             # (3*CH, LW)

    # Gates conv: sigmoid(ConvGates(cat(x, h))) -- contraction depth K*K*CH.
    acc_g = x3[:2 * CH] + jnp.dot(wgh_ref[...], hcol_ref[...],
                                  preferred_element_type=jnp.float32)
    ru = jax.nn.sigmoid(acc_g)                                   # (2*CH, LW)
    # TODO(synk): nn.Dropout(p=0.5) is stochastic; implemented as eval-mode identity.
    reset, update = ru[:CH], ru[CH:]

    # Candidate conv: tanh(Conv_ct(cat(x, reset*h))).  Reuse the cached masked
    # h taps in place: im2col(reset*h)[tap] == roll(reset) * (mask * roll(h)).
    for t, s in enumerate(shifts):
        hcol_ref[t * CH:(t + 1) * CH, :] = (
            rot(reset, s) * hcol_ref[t * CH:(t + 1) * CH, :])
    acc_c = x3[2 * CH:] + jnp.dot(wch_ref[...], hcol_ref[...],
                                  preferred_element_type=jnp.float32)
    ct = jnp.tanh(acc_c)                                         # (CH, LW)

    out_ref[0] = (update * ct + (1.0 - update) * h).astype(out_ref.dtype)


def prepare_convgru_params(wg_oihw, bg, wc_oihw, bc, input_size, hidden_size,
                           kernel_size):
    """One-time repack of the PyTorch Conv2d weights for the Pallas kernel."""
    CIN, CH, K = int(input_size), int(hidden_size), int(kernel_size)
    KK = K * K
    CP = (CIN // 8 + 1) * 8      # per-tap x rows, padded; >=1 spare row for bias

    # OIHW -> (Cout, K, K, Cin) so reshapes below are tap-major / channel-minor.
    wg2 = jnp.transpose(wg_oihw, (0, 2, 3, 1)).astype(jnp.float32)
    wc2 = jnp.transpose(wc_oihw, (0, 2, 3, 1)).astype(jnp.float32)

    # x part of both convs, fused, padded per tap to CP columns.
    wx = jnp.concatenate([wg2[..., :CIN], wc2[..., :CIN]], axis=0)   # (3CH,K,K,CIN)
    wx = jnp.pad(wx, ((0, 0), (0, 0), (0, 0), (0, CP - CIN)))        # (3CH,K,K,CP)
    wx = wx.reshape(3 * CH, KK, CP)
    # Biases ride on the all-ones row (slot CIN) of the always-unmasked centre tap.
    bias = jnp.concatenate([bg, bc], axis=0).astype(jnp.float32)     # (3CH,)
    centre = (K // 2) * K + (K // 2)
    wx = wx.at[:, centre, CIN].set(bias)
    wx3 = wx.reshape(3 * CH, KK * CP)

    wgh = wg2[..., CIN:].reshape(2 * CH, KK * CH)    # gates, hidden part
    wch = wc2[..., CIN:].reshape(CH, KK * CH)        # candidate, hidden part
    return wx3, wgh, wch


@functools.partial(jax.jit, static_argnums=(3, 4))
def conv_gru_cell(x_nchw, hidden_nchw, params, kernel_size,
                  images_per_block=None):
    """Pallas ConvGRUCell forward. Inputs/outputs use PyTorch NCHW convention."""
    wx3, wgh, wch = params
    N, CIN, H, W = x_nchw.shape
    K = int(kernel_size)
    P = K // 2
    KK = K * K
    CH = wgh.shape[0] // 2
    CP = wx3.shape[1] // KK
    HW = H * W
    assert CH % 8 == 0, "hidden_size must be a multiple of 8 (sublane tile)"

    if images_per_block is None:
        # Fold the whole batch into the lane axis (fewest grid steps, widest
        # lanes).  On v7x prefer images_per_block = ceil(N/2) so both
        # TensorCores get a block via the 'parallel' grid axis.
        images_per_block = N
    NB = max(1, min(int(images_per_block), N))
    assert N % NB == 0, "batch must be divisible by images_per_block"
    G = N // NB
    LW = NB * HW

    if hidden_nchw is None:
        # nn.init.kaiming_uniform_(hidden, mode='fan_in', nonlinearity='relu')
        fan_in = CH * H * W
        bound = math.sqrt(2.0) * math.sqrt(3.0 / fan_in)
        hidden_nchw = jax.random.uniform(jax.random.PRNGKey(42), (N, CH, H, W),
                                         jnp.float32, -bound, bound)

    x = x_nchw.astype(jnp.float32)
    h = hidden_nchw.astype(jnp.float32)

    # Batch-fold to lane-major slabs: (G, C, NB*HW), lane index = nb*HW + y*W + x.
    xg = x.reshape(G, NB, CIN, HW).transpose(0, 2, 1, 3).reshape(G, CIN, LW)
    hg = h.reshape(G, NB, CH, HW).transpose(0, 2, 1, 3).reshape(G, CH, LW)
    # Pad x channels to CP rows; row CIN is the all-ones bias row.
    pad = jnp.concatenate(
        [jnp.ones((G, 1, LW), jnp.float32),
         jnp.zeros((G, CP - CIN - 1, LW), jnp.float32)], axis=1)
    xp = jnp.concatenate([xg, pad], axis=1)                       # (G, CP, LW)

    # Multiplicative boundary masks for the K*K rolled windows ("same" zero
    # padding).  They depend only on lane % HW, so they tile across NB images
    # and also kill any cross-image bleed of the circular rotate.
    hw_idx = np.arange(LW) % HW
    py, px = hw_idx // W, hw_idx % W
    mask_np = np.stack(
        [((py + dy - P >= 0) & (py + dy - P < H) &
          (px + dx - P >= 0) & (px + dx - P < W))
         for dy in range(K) for dx in range(K)]).astype(np.float32)
    mask = jnp.asarray(mask_np)                                   # (KK, LW)

    kernel = functools.partial(_convgru_kernel, W=W, K=K, CH=CH, CP=CP, LW=LW)

    gemm_flops = 2 * LW * KK * (3 * CH * CP + 2 * CH * CH + CH * CH)
    cost = pl.CostEstimate(
        flops=G * (gemm_flops + 10 * CH * LW),
        transcendentals=G * 3 * CH * LW,
        bytes_accessed=G * 4 * ((CP + 2 * CH) * LW + KK * LW)
        + 4 * (wx3.size + wgh.size + wch.size))

    out = pl.pallas_call(
        kernel,
        out_shape=jax.ShapeDtypeStruct((G, CH, LW), jnp.float32),
        grid_spec=pltpu.PrefetchScalarGridSpec(
            num_scalar_prefetch=0,
            grid=(G,),
            in_specs=[
                pl.BlockSpec((1, CP, LW), lambda g: (g, 0, 0)),       # x slab
                pl.BlockSpec((1, CH, LW), lambda g: (g, 0, 0)),       # hidden
                pl.BlockSpec((KK, LW), lambda g: (0, 0)),             # masks
                pl.BlockSpec((3 * CH, KK * CP), lambda g: (0, 0)),    # fused x W
                pl.BlockSpec((2 * CH, KK * CH), lambda g: (0, 0)),    # gates  h W
                pl.BlockSpec((CH, KK * CH), lambda g: (0, 0)),        # cand.  h W
            ],
            out_specs=pl.BlockSpec((1, CH, LW), lambda g: (g, 0, 0)),
            scratch_shapes=[
                pltpu.VMEM((KK * CP, LW), jnp.float32),   # x im2col
                pltpu.VMEM((KK * CH, LW), jnp.float32),   # h / gated-h im2col
            ]),
        compiler_params=pltpu.CompilerParams(
            dimension_semantics=("parallel",)),
        cost_estimate=cost,
    )(xp, hg, mask, wx3, wgh, wch)

    # (G, CH, NB*HW) -> (N, CH, H, W); channel-major already, just un-fold.
    return (out.reshape(G, CH, NB, H, W)
               .transpose(0, 2, 1, 3, 4)
               .reshape(N, CH, H, W))


def reference_conv_gru(x, h, wg, bg, wc, bc, k):
    """Plain-JAX reference matching the PyTorch forward (eval-mode dropout)."""
    p = k // 2
    dn = ('NCHW', 'OIHW', 'NCHW')
    ch = h.shape[1]
    c1 = lax.conv_general_dilated(jnp.concatenate([x, h], axis=1), wg, (1, 1),
                                  [(p, p), (p, p)], dimension_numbers=dn)
    ru = jax.nn.sigmoid(c1 + bg[None, :, None, None])
    reset, update = ru[:, :ch], ru[:, ch:]
    gated = reset * h
    c2 = lax.conv_general_dilated(jnp.concatenate([x, gated], axis=1), wc, (1, 1),
                                  [(p, p), (p, p)], dimension_numbers=dn)
    ct = jnp.tanh(c2 + bc[None, :, None, None])
    return update * ct + (1.0 - update) * h


def init_conv_params(key, out_ch, in_ch, k):
    """Deterministic Conv2d-style init (uniform +/- 1/sqrt(fan_in))."""
    kw, kb = jax.random.split(key)
    fan_in = in_ch * k * k
    bound = 1.0 / math.sqrt(fan_in)
    w = jax.random.uniform(kw, (out_ch, in_ch, k, k), jnp.float32, -bound, bound)
    b = jax.random.uniform(kb, (out_ch,), jnp.float32, -bound, bound)
    return w, b


if __name__ == "__main__":
    N, CIN, CH, H, W, K = 2, 4, 8, 16, 16, 3

    key = jax.random.PRNGKey(0)
    kx, kh, kg, kc = jax.random.split(key, 4)
    x = jax.random.normal(kx, (N, CIN, H, W), jnp.float32)
    hidden = jax.random.normal(kh, (N, CH, H, W), jnp.float32)
    wg, bg = init_conv_params(kg, 2 * CH, CIN + CH, K)   # ConvGates
    wc, bc = init_conv_params(kc, CH, CIN + CH, K)       # Conv_ct

    # One-time weight repack (hoisted out of the per-call path).
    params = prepare_convgru_params(wg, bg, wc, bc, CIN, CH, K)

    out = conv_gru_cell(x, hidden, params, K)
    out = jax.block_until_ready(out)

    ref = reference_conv_gru(x, hidden, wg, bg, wc, bc, K)
    assert out.shape == (N, CH, H, W), out.shape
    max_err = float(jnp.max(jnp.abs(out - ref)))
    assert jnp.allclose(out, ref, atol=1e-5, rtol=1e-5), f"max_err={max_err}"

    print("KERNEL_OK")
</pallas_src>

<mosaic_0001>
module attributes {stable_mosaic.version = 11 : i64} {
  func.func @_convgru_kernel(%arg0: i32, %arg1: memref<1x8x512xf32, #tpu.memory_space<vmem>>, %arg2: memref<1x8x512xf32, #tpu.memory_space<vmem>>, %arg3: memref<9x512xf32, #tpu.memory_space<vmem>>, %arg4: memref<24x72xf32, #tpu.memory_space<vmem>>, %arg5: memref<16x72xf32, #tpu.memory_space<vmem>>, %arg6: memref<8x72xf32, #tpu.memory_space<vmem>>, %arg7: memref<1x8x512xf32, #tpu.memory_space<vmem>>, %arg8: memref<72x512xf32, #tpu.memory_space<vmem>>, %arg9: memref<72x512xf32, #tpu.memory_space<vmem>>) attributes {dimension_semantics = [#tpu.dimension_semantics<parallel>], iteration_bounds = array<i64: 1>, scalar_prefetch = 0 : i64, scratch_operands = 2 : i64, tpu.core_type = #tpu.core_type<tc>, window_params = [{transform_indices = @transform_0, window_bounds = array<i64: 1, 8, 512>}, {transform_indices = @transform_1, window_bounds = array<i64: 1, 8, 512>}, {pipeline_mode = #tpu.pipeline_mode<synchronous>, transform_indices = @transform_2, window_bounds = array<i64: 9, 512>}, {pipeline_mode = #tpu.pipeline_mode<synchronous>, transform_indices = @transform_3, window_bounds = array<i64: 24, 72>}, {pipeline_mode = #tpu.pipeline_mode<synchronous>, transform_indices = @transform_4, window_bounds = array<i64: 16, 72>}, {pipeline_mode = #tpu.pipeline_mode<synchronous>, transform_indices = @transform_5, window_bounds = array<i64: 8, 72>}, {transform_indices = @transform_6, window_bounds = array<i64: 1, 8, 512>}]} {
    %c0 = arith.constant 0 : index
    %c0_0 = arith.constant 0 : index
    %c0_1 = arith.constant 0 : index
    %0 = vector.load %arg1[%c0, %c0_0, %c0_1] : memref<1x8x512xf32, #tpu.memory_space<vmem>>, vector<1x8x512xf32>
    %1 = vector.shape_cast %0 : vector<1x8x512xf32> to vector<8x512xf32>
    %c0_2 = arith.constant 0 : index
    %c0_3 = arith.constant 0 : index
    %c0_4 = arith.constant 0 : index
    %2 = vector.load %arg2[%c0_2, %c0_3, %c0_4] : memref<1x8x512xf32, #tpu.memory_space<vmem>>, vector<1x8x512xf32>
    %3 = vector.shape_cast %2 : vector<1x8x512xf32> to vector<8x512xf32>
    %c0_5 = arith.constant 0 : index
    %c0_6 = arith.constant 0 : index
    %4 = vector.load %arg3[%c0_5, %c0_6] : memref<9x512xf32, #tpu.memory_space<vmem>>, vector<9x512xf32>
    %5 = vector.extract_strided_slice %4 {offsets = [0, 0], sizes = [1, 512], strides = [1, 1]} : vector<9x512xf32> to vector<1x512xf32>
    %c17_i32 = arith.constant 17 : i32
    %6 = tpu.dynamic_rotate %1 by %c17_i32 dim 1 : vector<8x512xf32>, i32 -> vector<8x512xf32>
    %7 = vector.broadcast %5 : vector<1x512xf32> to vector<8x512xf32>
    %8 = arith.mulf %6, %7 : vector<8x512xf32>
    %c0_7 = arith.constant 0 : index
    %c0_8 = arith.constant 0 : index
    %9 = vector.load %arg8[%c0_7, %c0_8] : memref<72x512xf32, #tpu.memory_space<vmem>>, vector<8x512xf32>
    tpu.vector_store %arg8[%c0_7, %c0_8], %8 {strides = array<i32>} : memref<72x512xf32, #tpu.memory_space<vmem>>, vector<8x512xf32>,
    %c17_i32_9 = arith.constant 17 : i32
    %10 = tpu.dynamic_rotate %3 by %c17_i32_9 dim 1 : vector<8x512xf32>, i32 -> vector<8x512xf32>
    %11 = vector.broadcast %5 : vector<1x512xf32> to vector<8x512xf32>
    %12 = arith.mulf %10, %11 : vector<8x512xf32>
    %c0_10 = arith.constant 0 : index
    %c0_11 = arith.constant 0 : index
    %13 = vector.load %arg9[%c0_10, %c0_11] : memref<72x512xf32, #tpu.memory_space<vmem>>, vector<8x512xf32>
    tpu.vector_store %arg9[%c0_10, %c0_11], %12 {strides = array<i32>} : memref<72x512xf32, #tpu.memory_space<vmem>>, vector<8x512xf32>,
    %14 = vector.extract_strided_slice %4 {offsets = [1, 0], sizes = [1, 512], strides = [1, 1]} : vector<9x512xf32> to vector<1x512xf32>
    %c16_i32 = arith.constant 16 : i32
    %15 = tpu.dynamic_rotate %1 by %c16_i32 dim 1 : vector<8x512xf32>, i32 -> vector<8x512xf32>
    %16 = vector.broadcast %14 : vector<1x512xf32> to vector<8x512xf32>
    %17 = arith.mulf %15, %16 : vector<8x512xf32>
    %c8 = arith.constant 8 : index
    %c0_12 = arith.constant 0 : index
    %18 = vector.load %arg8[%c8, %c0_12] : memref<72x512xf32, #tpu.memory_space<vmem>>, vector<8x512xf32>
    tpu.vector_store %arg8[%c8, %c0_12], %17 {strides = array<i32>} : memref<72x512xf32, #tpu.memory_space<vmem>>, vector<8x512xf32>,
    %c16_i32_13 = arith.constant 16 : i32
    %19 = tpu.dynamic_rotate %3 by %c16_i32_13 dim 1 : vector<8x512xf32>, i32 -> vector<8x512xf32>
    %20 = vector.broadcast %14 : vector<1x512xf32> to vector<8x512xf32>
    %21 = arith.mulf %19, %20 : vector<8x512xf32>
    %c8_14 = arith.constant 8 : index
    %c0_15 = arith.constant 0 : index
    %22 = vector.load %arg9[%c8_14, %c0_15] : memref<72x512xf32, #tpu.memory_space<vmem>>, vector<8x512xf32>
    tpu.vector_store %arg9[%c8_14, %c0_15], %21 {strides = array<i32>} : memref<72x512xf32, #tpu.memory_space<vmem>>, vector<8x512xf32>,
    %23 = vector.extract_strided_slice %4 {offsets = [2, 0], sizes = [1, 512], strides = [1, 1]} : vector<9x512xf32> to vector<1x512xf32>
    %c15_i32 = arith.constant 15 : i32
    %24 = tpu.dynamic_rotate %1 by %c15_i32 dim 1 : vector<8x512xf32>, i32 -> vector<8x512xf32>
    %25 = vector.broadcast %23 : vector<1x512xf32> to vector<8x512xf32>
    %26 = arith.mulf %24, %25 : vector<8x512xf32>
    %c16 = arith.constant 16 : index
    %c0_16 = arith.constant 0 : index
    %27 = vector.load %arg8[%c16, %c0_16] : memref<72x512xf32, #tpu.memory_space<vmem>>, vector<8x512xf32>
    tpu.vector_store %arg8[%c16, %c0_16], %26 {strides = array<i32>} : memref<72x512xf32, #tpu.memory_space<vmem>>, vector<8x512xf32>,
    %c15_i32_17 = arith.constant 15 : i32
    %28 = tpu.dynamic_rotate %3 by %c15_i32_17 dim 1 : vector<8x512xf32>, i32 -> vector<8x512xf32>
    %29 = vector.broadcast %23 : vector<1x512xf32> to vector<8x512xf32>
    %30 = arith.mulf %28, %29 : vector<8x512xf32>
    %c16_18 = arith.constant 16 : index
    %c0_19 = arith.constant 0 : index
    %31 = vector.load %arg9[%c16_18, %c0_19] : memref<72x512xf32, #tpu.memory_space<vmem>>, vector<8x512xf32>
    tpu.vector_store %arg9[%c16_18, %c0_19], %30 {strides = array<i32>} : memref<72x512xf32, #tpu.memory_space<vmem>>, vector<8x512xf32>,
    %32 = vector.extract_strided_slice %4 {offsets = [3, 0], sizes = [1, 512], strides = [1, 1]} : vector<9x512xf32> to vector<1x512xf32>
    %c1_i32 = arith.constant 1 : i32
    %33 = tpu.dynamic_rotate %1 by %c1_i32 dim 1 : vector<8x512xf32>, i32 -> vector<8x512xf32>
    %34 = vector.broadcast %32 : vector<1x512xf32> to vector<8x512xf32>
    %35 = arith.mulf %33, %34 : vector<8x512xf32>
    %c24 = arith.constant 24 : index
    %c0_20 = arith.constant 0 : index
    %36 = vector.load %arg8[%c24, %c0_20] : memref<72x512xf32, #tpu.memory_space<vmem>>, vector<8x512xf32>
    tpu.vector_store %arg8[%c24, %c0_20], %35 {strides = array<i32>} : memref<72x512xf32, #tpu.memory_space<vmem>>, vector<8x512xf32>,
    %c1_i32_21 = arith.constant 1 : i32
    %37 = tpu.dynamic_rotate %3 by %c1_i32_21 dim 1 : vector<8x512xf32>, i32 -> vector<8x512xf32>
    %38 = vector.broadcast %32 : vector<1x512xf32> to vector<8x512xf32>
    %39 = arith.mulf %37, %38 : vector<8x512xf32>
    %c24_22 = arith.constant 24 : index
    %c0_23 = arith.constant 0 : index
    %40 = vector.load %arg9[%c24_22, %c0_23] : memref<72x512xf32, #tpu.memory_space<vmem>>, vector<8x512xf32>
    tpu.vector_store %arg9[%c24_22, %c0_23], %39 {strides = array<i32>} : memref<72x512xf32, #tpu.memory_space<vmem>>, vector<8x512xf32>,
    %41 = vector.extract_strided_slice %4 {offsets = [4, 0], sizes = [1, 512], strides = [1, 1]} : vector<9x512xf32> to vector<1x512xf32>
    %42 = vector.broadcast %41 : vector<1x512xf32> to vector<8x512xf32>
    %43 = arith.mulf %1, %42 : vector<8x512xf32>
    %c32 = arith.constant 32 : index
    %c0_24 = arith.constant 0 : index
    %44 = vector.load %arg8[%c32, %c0_24] : memref<72x512xf32, #tpu.memory_space<vmem>>, vector<8x512xf32>
    tpu.vector_store %arg8[%c32, %c0_24], %43 {strides = array<i32>} : memref<72x512xf32, #tpu.memory_space<vmem>>, vector<8x512xf32>,
    %45 = vector.broadcast %41 : vector<1x512xf32> to vector<8x512xf32>
    %46 = arith.mulf %3, %45 : vector<8x512xf32>
    %c32_25 = arith.constant 32 : index
    %c0_26 = arith.constant 0 : index
    %47 = vector.load %arg9[%c32_25, %c0_26] : memref<72x512xf32, #tpu.memory_space<vmem>>, vector<8x512xf32>
    tpu.vector_store %arg9[%c32_25, %c0_26], %46 {strides = array<i32>} : memref<72x512xf32, #tpu.memory_space<vmem>>, vector<8x512xf32>,
    %48 = vector.extract_strided_slice %4 {offsets = [5, 0], sizes = [1, 512], strides = [1, 1]} : vector<9x512xf32> to vector<1x512xf32>
    %c511_i32 = arith.constant 511 : i32
    %49 = tpu.dynamic_rotate %1 by %c511_i32 dim 1 : vector<8x512xf32>, i32 -> vector<8x512xf32>
    %50 = vector.broadcast %48 : vector<1x512xf32> to vector<8x512xf32>
    %51 = arith.mulf %49, %50 : vector<8x512xf32>
    %c40 = arith.constant 40 : index
    %c0_27 = arith.constant 0 : index
    %52 = vector.load %arg8[%c40, %c0_27] : memref<72x512xf32, #tpu.memory_space<vmem>>, vector<8x512xf32>
    tpu.vector_store %arg8[%c40, %c0_27], %51 {strides = array<i32>} : memref<72x512xf32, #tpu.memory_space<vmem>>, vector<8x512xf32>,
    %c511_i32_28 = arith.constant 511 : i32
    %53 = tpu.dynamic_rotate %3 by %c511_i32_28 dim 1 : vector<8x512xf32>, i32 -> vector<8x512xf32>
    %54 = vector.broadcast %48 : vector<1x512xf32> to vector<8x512xf32>
    %55 = arith.mulf %53, %54 : vector<8x512xf32>
    %c40_29 = arith.constant 40 : index
    %c0_30 = arith.constant 0 : index
    %56 = vector.load %arg9[%c40_29, %c0_30] : memref<72x512xf32, #tpu.memory_space<vmem>>, vector<8x512xf32>
    tpu.vector_store %arg9[%c40_29, %c0_30], %55 {strides = array<i32>} : memref<72x512xf32, #tpu.memory_space<vmem>>, vector<8x512xf32>,
    %57 = vector.extract_strided_slice %4 {offsets = [6, 0], sizes = [1, 512], strides = [1, 1]} : vector<9x512xf32> to vector<1x512xf32>
    %c497_i32 = arith.constant 497 : i32
    %58 = tpu.dynamic_rotate %1 by %c497_i32 dim 1 : vector<8x512xf32>, i32 -> vector<8x512xf32>
    %59 = vector.broadcast %57 : vector<1x512xf32> to vector<8x512xf32>
    %60 = arith.mulf %58, %59 : vector<8x512xf32>
    %c48 = arith.constant 48 : index
    %c0_31 = arith.constant 0 : index
    %61 = vector.load %arg8[%c48, %c0_31] : memref<72x512xf32, #tpu.memory_space<vmem>>, vector<8x512xf32>
    tpu.vector_store %arg8[%c48, %c0_31], %60 {strides = array<i32>} : memref<72x512xf32, #tpu.memory_space<vmem>>, vector<8x512xf32>,
    %c497_i32_32 = arith.constant 497 : i32
    %62 = tpu.dynamic_rotate %3 by %c497_i32_32 dim 1 : vector<8x512xf32>, i32 -> vector<8x512xf32>
    %63 = vector.broadcast %57 : vector<1x512xf32> to vector<8x512xf32>
    %64 = arith.mulf %62, %63 : vector<8x512xf32>
    %c48_33 = arith.constant 48 : index
    %c0_34 = arith.constant 0 : index
    %65 = vector.load %arg9[%c48_33, %c0_34] : memref<72x512xf32, #tpu.memory_space<vmem>>, vector<8x512xf32>
    tpu.vector_store %arg9[%c48_33, %c0_34], %64 {strides = array<i32>} : memref<72x512xf32, #tpu.memory_space<vmem>>, vector<8x512xf32>,
    %66 = vector.extract_strided_slice %4 {offsets = [7, 0], sizes = [1, 512], strides = [1, 1]} : vector<9x512xf32> to vector<1x512xf32>
    %c496_i32 = arith.constant 496 : i32
    %67 = tpu.dynamic_rotate %1 by %c496_i32 dim 1 : vector<8x512xf32>, i32 -> vector<8x512xf32>
    %68 = vector.broadcast %66 : vector<1x512xf32> to vector<8x512xf32>
    %69 = arith.mulf %67, %68 : vector<8x512xf32>
    %c56 = arith.constant 56 : index
    %c0_35 = arith.constant 0 : index
    %70 = vector.load %arg8[%c56, %c0_35] : memref<72x512xf32, #tpu.memory_space<vmem>>, vector<8x512xf32>
    tpu.vector_store %arg8[%c56, %c0_35], %69 {strides = array<i32>} : memref<72x512xf32, #tpu.memory_space<vmem>>, vector<8x512xf32>,
    %c496_i32_36 = arith.constant 496 : i32
    %71 = tpu.dynamic_rotate %3 by %c496_i32_36 dim 1 : vector<8x512xf32>, i32 -> vector<8x512xf32>
    %72 = vector.broadcast %66 : vector<1x512xf32> to vector<8x512xf32>
    %73 = arith.mulf %71, %72 : vector<8x512xf32>
    %c56_37 = arith.constant 56 : index
    %c0_38 = arith.constant 0 : index
    %74 = vector.load %arg9[%c56_37, %c0_38] : memref<72x512xf32, #tpu.memory_space<vmem>>, vector<8x512xf32>
    tpu.vector_store %arg9[%c56_37, %c0_38], %73 {strides = array<i32>} : memref<72x512xf32, #tpu.memory_space<vmem>>, vector<8x512xf32>,
    %75 = vector.extract_strided_slice %4 {offsets = [8, 0], sizes = [1, 512], strides = [1, 1]} : vector<9x512xf32> to vector<1x512xf32>
    %c495_i32 = arith.constant 495 : i32
    %76 = tpu.dynamic_rotate %1 by %c495_i32 dim 1 : vector<8x512xf32>, i32 -> vector<8x512xf32>
    %77 = vector.broadcast %75 : vector<1x512xf32> to vector<8x512xf32>
    %78 = arith.mulf %76, %77 : vector<8x512xf32>
    %c64 = arith.constant 64 : index
    %c0_39 = arith.constant 0 : index
    %79 = vector.load %arg8[%c64, %c0_39] : memref<72x512xf32, #tpu.memory_space<vmem>>, vector<8x512xf32>
    tpu.vector_store %arg8[%c64, %c0_39], %78 {strides = array<i32>} : memref<72x512xf32, #tpu.memory_space<vmem>>, vector<8x512xf32>,
    %c495_i32_40 = arith.constant 495 : i32
    %80 = tpu.dynamic_rotate %3 by %c495_i32_40 dim 1 : vector<8x512xf32>, i32 -> vector<8x512xf32>
    %81 = vector.broadcast %75 : vector<1x512xf32> to vector<8x512xf32>
    %82 = arith.mulf %80, %81 : vector<8x512xf32>
    %c64_41 = arith.constant 64 : index
    %c0_42 = arith.constant 0 : index
    %83 = vector.load %arg9[%c64_41, %c0_42] : memref<72x512xf32, #tpu.memory_space<vmem>>, vector<8x512xf32>
    tpu.vector_store %arg9[%c64_41, %c0_42], %82 {strides = array<i32>} : memref<72x512xf32, #tpu.memory_space<vmem>>, vector<8x512xf32>,
    %c0_43 = arith.constant 0 : index
    %c0_44 = arith.constant 0 : index
    %84 = vector.load %arg4[%c0_43, %c0_44] : memref<24x72xf32, #tpu.memory_space<vmem>>, vector<24x72xf32>
    %c0_45 = arith.constant 0 : index
    %c0_46 = arith.constant 0 : index
    %85 = vector.load %arg8[%c0_45, %c0_46] : memref<72x512xf32, #tpu.memory_space<vmem>>, vector<72x512xf32>
    %cst = arith.constant dense<0.000000e+00> : vector<24x512xf32>
    %86 = tpu.matmul %84, %85, %cst {dimension_numbers = #tpu.dot_dimension_numbers<[1], [0], [0], [1], [0, 0, 1, 1], [], []>} : vector<24x72xf32>, vector<72x512xf32>, vector<24x512xf32> -> vector<24x512xf32>
    %87 = vector.extract_strided_slice %86 {offsets = [0, 0], sizes = [16, 512], strides = [1, 1]} : vector<24x512xf32> to vector<16x512xf32>
    %c0_47 = arith.constant 0 : index
    %c0_48 = arith.constant 0 : index
    %88 = vector.load %arg5[%c0_47, %c0_48] : memref<16x72xf32, #tpu.memory_space<vmem>>, vector<16x72xf32>
    %c0_49 = arith.constant 0 : index
    %c0_50 = arith.constant 0 : index
    %89 = vector.load %arg9[%c0_49, %c0_50] : memref<72x512xf32, #tpu.memory_space<vmem>>, vector<72x512xf32>
    %cst_51 = arith.constant dense<0.000000e+00> : vector<16x512xf32>
    %90 = tpu.matmul %88, %89, %cst_51 {dimension_numbers = #tpu.dot_dimension_numbers<[1], [0], [0], [1], [0, 0, 1, 1], [], []>} : vector<16x72xf32>, vector<72x512xf32>, vector<16x512xf32> -> vector<16x512xf32>
    %91 = arith.addf %87, %90 : vector<16x512xf32>
    %92 = arith.negf %91 : vector<16x512xf32>
    %93 = math.exp %92 : vector<16x512xf32>
    %cst_52 = arith.constant 1.000000e+00 : f32
    %94 = vector.broadcast %cst_52 : f32 to vector<16x512xf32>
    %95 = arith.addf %94, %93 : vector<16x512xf32>
    %96 = arith.divf %94, %95 : vector<16x512xf32>
    %97 = vector.extract_strided_slice %96 {offsets = [0, 0], sizes = [8, 512], strides = [1, 1]} : vector<16x512xf32> to vector<8x512xf32>
    %98 = vector.extract_strided_slice %96 {offsets = [8, 0], sizes = [8, 512], strides = [1, 1]} : vector<16x512xf32> to vector<8x512xf32>
    %c17_i32_53 = arith.constant 17 : i32
    %99 = tpu.dynamic_rotate %97 by %c17_i32_53 dim 1 : vector<8x512xf32>, i32 -> vector<8x512xf32>
    %c0_54 = arith.constant 0 : index
    %c0_55 = arith.constant 0 : index
    %100 = vector.load %arg9[%c0_54, %c0_55] : memref<72x512xf32, #tpu.memory_space<vmem>>, vector<8x512xf32>
    %101 = arith.mulf %99, %100 : vector<8x512xf32>
    %c0_56 = arith.constant 0 : index
    %c0_57 = arith.constant 0 : index
    %102 = vector.load %arg9[%c0_56, %c0_57] : memref<72x512xf32, #tpu.memory_space<vmem>>, vector<8x512xf32>
    tpu.vector_store %arg9[%c0_56, %c0_57], %101 {strides = array<i32>} : memref<72x512xf32, #tpu.memory_space<vmem>>, vector<8x512xf32>,
    %c16_i32_58 = arith.constant 16 : i32
    %103 = tpu.dynamic_rotate %97 by %c16_i32_58 dim 1 : vector<8x512xf32>, i32 -> vector<8x512xf32>
    %c8_59 = arith.constant 8 : index
    %c0_60 = arith.constant 0 : index
    %104 = vector.load %arg9[%c8_59, %c0_60] : memref<72x512xf32, #tpu.memory_space<vmem>>, vector<8x512xf32>
    %105 = arith.mulf %103, %104 : vector<8x512xf32>
    %c8_61 = arith.constant 8 : index
    %c0_62 = arith.constant 0 : index
    %106 = vector.load %arg9[%c8_61, %c0_62] : memref<72x512xf32, #tpu.memory_space<vmem>>, vector<8x512xf32>
    tpu.vector_store %arg9[%c8_61, %c0_62], %105 {strides = array<i32>} : memref<72x512xf32, #tpu.memory_space<vmem>>, vector<8x512xf32>,
    %c15_i32_63 = arith.constant 15 : i32
    %107 = tpu.dynamic_rotate %97 by %c15_i32_63 dim 1 : vector<8x512xf32>, i32 -> vector<8x512xf32>
    %c16_64 = arith.constant 16 : index
    %c0_65 = arith.constant 0 : index
    %108 = vector.load %arg9[%c16_64, %c0_65] : memref<72x512xf32, #tpu.memory_space<vmem>>, vector<8x512xf32>
    %109 = arith.mulf %107, %108 : vector<8x512xf32>
    %c16_66 = arith.constant 16 : index
    %c0_67 = arith.constant 0 : index
    %110 = vector.load %arg9[%c16_66, %c0_67] : memref<72x512xf32, #tpu.memory_space<vmem>>, vector<8x512xf32>
    tpu.vector_store %arg9[%c16_66, %c0_67], %109 {strides = array<i32>} : memref<72x512xf32, #tpu.memory_space<vmem>>, vector<8x512xf32>,
    %c1_i32_68 = arith.constant 1 : i32
    %111 = tpu.dynamic_rotate %97 by %c1_i32_68 dim 1 : vector<8x512xf32>, i32 -> vector<8x512xf32>
    %c24_69 = arith.constant 24 : index
    %c0_70 = arith.constant 0 : index
    %112 = vector.load %arg9[%c24_69, %c0_70] : memref<72x512xf32, #tpu.memory_space<vmem>>, vector<8x512xf32>
    %113 = arith.mulf %111, %112 : vector<8x512xf32>
    %c24_71 = arith.constant 24 : index
    %c0_72 = arith.constant 0 : index
    %114 = vector.load %arg9[%c24_71, %c0_72] : memref<72x512xf32, #tpu.memory_space<vmem>>, vector<8x512xf32>
    tpu.vector_store %arg9[%c24_71, %c0_72], %113 {strides = array<i32>} : memref<72x512xf32, #tpu.memory_space<vmem>>, vector<8x512xf32>,
    %c32_73 = arith.constant 32 : index
    %c0_74 = arith.constant 0 : index
    %115 = vector.load %arg9[%c32_73, %c0_74] : memref<72x512xf32, #tpu.memory_space<vmem>>, vector<8x512xf32>
    %116 = arith.mulf %97, %115 : vector<8x512xf32>
    %c32_75 = arith.constant 32 : index
    %c0_76 = arith.constant 0 : index
    %117 = vector.load %arg9[%c32_75, %c0_76] : memref<72x512xf32, #tpu.memory_space<vmem>>, vector<8x512xf32>
    tpu.vector_store %arg9[%c32_75, %c0_76], %116 {strides = array<i32>} : memref<72x512xf32, #tpu.memory_space<vmem>>, vector<8x512xf32>,
    %c511_i32_77 = arith.constant 511 : i32
    %118 = tpu.dynamic_rotate %97 by %c511_i32_77 dim 1 : vector<8x512xf32>, i32 -> vector<8x512xf32>
    %c40_78 = arith.constant 40 : index
    %c0_79 = arith.constant 0 : index
    %119 = vector.load %arg9[%c40_78, %c0_79] : memref<72x512xf32, #tpu.memory_space<vmem>>, vector<8x512xf32>
    %120 = arith.mulf %118, %119 : vector<8x512xf32>
    %c40_80 = arith.constant 40 : index
    %c0_81 = arith.constant 0 : index
    %121 = vector.load %arg9[%c40_80, %c0_81] : memref<72x512xf32, #tpu.memory_space<vmem>>, vector<8x512xf32>
    tpu.vector_store %arg9[%c40_80, %c0_81], %120 {strides = array<i32>} : memref<72x512xf32, #tpu.memory_space<vmem>>, vector<8x512xf32>,
    %c497_i32_82 = arith.constant 497 : i32
    %122 = tpu.dynamic_rotate %97 by %c497_i32_82 dim 1 : vector<8x512xf32>, i32 -> vector<8x512xf32>
    %c48_83 = arith.constant 48 : index
    %c0_84 = arith.constant 0 : index
    %123 = vector.load %arg9[%c48_83, %c0_84] : memref<72x512xf32, #tpu.memory_space<vmem>>, vector<8x512xf32>
    %124 = arith.mulf %122, %123 : vector<8x512xf32>
    %c48_85 = arith.constant 48 : index
    %c0_86 = arith.constant 0 : index
    %125 = vector.load %arg9[%c48_85, %c0_86] : memref<72x512xf32, #tpu.memory_space<vmem>>, vector<8x512xf32>
    tpu.vector_store %arg9[%c48_85, %c0_86], %124 {strides = array<i32>} : memref<72x512xf32, #tpu.memory_space<vmem>>, vector<8x512xf32>,
    %c496_i32_87 = arith.constant 496 : i32
    %126 = tpu.dynamic_rotate %97 by %c496_i32_87 dim 1 : vector<8x512xf32>, i32 -> vector<8x512xf32>
    %c56_88 = arith.constant 56 : index
    %c0_89 = arith.constant 0 : index
    %127 = vector.load %arg9[%c56_88, %c0_89] : memref<72x512xf32, #tpu.memory_space<vmem>>, vector<8x512xf32>
    %128 = arith.mulf %126, %127 : vector<8x512xf32>
    %c56_90 = arith.constant 56 : index
    %c0_91 = arith.constant 0 : index
    %129 = vector.load %arg9[%c56_90, %c0_91] : memref<72x512xf32, #tpu.memory_space<vmem>>, vector<8x512xf32>
    tpu.vector_store %arg9[%c56_90, %c0_91], %128 {strides = array<i32>} : memref<72x512xf32, #tpu.memory_space<vmem>>, vector<8x512xf32>,
    %c495_i32_92 = arith.constant 495 : i32
    %130 = tpu.dynamic_rotate %97 by %c495_i32_92 dim 1 : vector<8x512xf32>, i32 -> vector<8x512xf32>
    %c64_93 = arith.constant 64 : index
    %c0_94 = arith.constant 0 : index
    %131 = vector.load %arg9[%c64_93, %c0_94] : memref<72x512xf32, #tpu.memory_space<vmem>>, vector<8x512xf32>
    %132 = arith.mulf %130, %131 : vector<8x512xf32>
    %c64_95 = arith.constant 64 : index
    %c0_96 = arith.constant 0 : index
    %133 = vector.load %arg9[%c64_95, %c0_96] : memref<72x512xf32, #tpu.memory_space<vmem>>, vector<8x512xf32>
    tpu.vector_store %arg9[%c64_95, %c0_96], %132 {strides = array<i32>} : memref<72x512xf32, #tpu.memory_space<vmem>>, vector<8x512xf32>,
    %134 = vector.extract_strided_slice %86 {offsets = [16, 0], sizes = [8, 512], strides = [1, 1]} : vector<24x512xf32> to vector<8x512xf32>
    %c0_97 = arith.constant 0 : index
    %c0_98 = arith.constant 0 : index
    %135 = vector.load %arg6[%c0_97, %c0_98] : memref<8x72xf32, #tpu.memory_space<vmem>>, vector<8x72xf32>
    %c0_99 = arith.constant 0 : index
    %c0_100 = arith.constant 0 : index
    %136 = vector.load %arg9[%c0_99, %c0_100] : memref<72x512xf32, #tpu.memory_space<vmem>>, vector<72x512xf32>
    %cst_101 = arith.constant dense<0.000000e+00> : vector<8x512xf32>
    %137 = tpu.matmul %135, %136, %cst_101 {dimension_numbers = #tpu.dot_dimension_numbers<[1], [0], [0], [1], [0, 0, 1, 1], [], []>} : vector<8x72xf32>, vector<72x512xf32>, vector<8x512xf32> -> vector<8x512xf32>
    %138 = arith.addf %134, %137 : vector<8x512xf32>
    %139 = math.tanh %138 : vector<8x512xf32>
    %140 = arith.mulf %98, %139 : vector<8x512xf32>
    %cst_102 = arith.constant 1.000000e+00 : f32
    %141 = vector.broadcast %cst_102 : f32 to vector<8x512xf32>
    %142 = arith.subf %141, %98 : vector<8x512xf32>
    %143 = arith.mulf %142, %3 : vector<8x512xf32>
    %144 = arith.addf %140, %143 : vector<8x512xf32>
    %c0_103 = arith.constant 0 : index
    %c0_104 = arith.constant 0 : index
    %c0_105 = arith.constant 0 : index
    %145 = vector.load %arg7[%c0_103, %c0_104, %c0_105] : memref<1x8x512xf32, #tpu.memory_space<vmem>>, vector<1x8x512xf32>
    %146 = vector.shape_cast %145 : vector<1x8x512xf32> to vector<8x512xf32>
    %147 = vector.shape_cast %144 : vector<8x512xf32> to vector<1x8x512xf32>
    tpu.vector_store %arg7[%c0_103, %c0_104, %c0_105], %147 {strides = array<i32>} : memref<1x8x512xf32, #tpu.memory_space<vmem>>, vector<1x8x512xf32>,
    return
  }
  func.func @transform_0(%arg0: i32) -> (i32, i32, i32) {
    %c0_i32 = arith.constant 0 : i32
    %c0_i32_0 = arith.constant 0 : i32
    %c0_i32_1 = arith.constant 0 : i32
    return %arg0, %c0_i32, %c0_i32_0 : i32, i32, i32
  }
  func.func @transform_1(%arg0: i32) -> (i32, i32, i32) {
    %c0_i32 = arith.constant 0 : i32
    %c0_i32_0 = arith.constant 0 : i32
    %c0_i32_1 = arith.constant 0 : i32
    return %arg0, %c0_i32, %c0_i32_0 : i32, i32, i32
  }
  func.func @transform_2(%arg0: i32) -> (i32, i32) {
    %c0_i32 = arith.constant 0 : i32
    %c0_i32_0 = arith.constant 0 : i32
    %c0_i32_1 = arith.constant 0 : i32
    return %c0_i32, %c0_i32_0 : i32, i32
  }
  func.func @transform_3(%arg0: i32) -> (i32, i32) {
    %c0_i32 = arith.constant 0 : i32
    %c0_i32_0 = arith.constant 0 : i32
    %c0_i32_1 = arith.constant 0 : i32
    return %c0_i32, %c0_i32_0 : i32, i32
  }
  func.func @transform_4(%arg0: i32) -> (i32, i32) {
    %c0_i32 = arith.constant 0 : i32
    %c0_i32_0 = arith.constant 0 : i32
    %c0_i32_1 = arith.constant 0 : i32
    return %c0_i32, %c0_i32_0 : i32, i32
  }
  func.func @transform_5(%arg0: i32) -> (i32, i32) {
    %c0_i32 = arith.constant 0 : i32
    %c0_i32_0 = arith.constant 0 : i32
    %c0_i32_1 = arith.constant 0 : i32
    return %c0_i32, %c0_i32_0 : i32, i32
  }
  func.func @transform_6(%arg0: i32) -> (i32, i32, i32) {
    %c0_i32 = arith.constant 0 : i32
    %c0_i32_0 = arith.constant 0 : i32
    %c0_i32_1 = arith.constant 0 : i32
    return %arg0, %c0_i32, %c0_i32_0 : i32, i32, i32
  }
}

</mosaic_0001>

<llo_original>
// kernel: conv_gru_cell.1
$region0: #{conv_gru_cell.1}
  #allocation0 [shape = 'u32[]', space=smem, size = 0x4, offset = 0x4, fixed_abs, tag = 'smem constant byte address 0x4 - core index']
  #allocation1 [shape = 'u32[72,128]{1,0:T(1,128)}', space=vmem, size = 0x9000, scoped, tag = 'internal scratch']
  #allocation2 [shape = 'f32[72,512]{1,0:T(8,128)}', space=vmem, size = 0x24000, scoped, tag = 'scratch operand']
  #allocation3 [shape = 'f32[72,512]{1,0:T(8,128)}', space=vmem, size = 0x24000, scoped, tag = 'scratch operand']
  %s0 = inlined_call_operand.vmem [shape: f32[1,8,512], index: 0, kind: input, shape index: {}]
  %s1 = inlined_call_operand.vmem [shape: f32[1,8,512], index: 1, kind: input, shape index: {}]
  %s2 = inlined_call_operand.vmem [shape: f32[9,512], index: 2, kind: input, shape index: {}]
  %s3 = inlined_call_operand.vmem [shape: f32[24,72], index: 3, kind: input, shape index: {}]
  %s4 = inlined_call_operand.vmem [shape: f32[16,72], index: 4, kind: input, shape index: {}]
  %s5 = inlined_call_operand.vmem [shape: f32[8,72], index: 5, kind: input, shape index: {}]
  %s6 = inlined_call_operand.vmem [shape: f32[1,8,512], index: 6, kind: output, shape index: {}]
  %s7 = sld [smem:[#allocation0]]
  $region34: #{conv_gru_cell.1} parent=0
    _
  %s9 = ssub.s32 1, %s7
  %s10 = scalar_select 0, %s9, %s7
  // Predicated region
  $region2: #{conv_gru_cell.1} parent=0 // pred_check
    _
  $region3: #{conv_gru_cell.1} parent=0 // pred_check_branch
    %12 = sbr.rel (0) target = $region5
  $region4: #{conv_gru_cell.1} parent=0 // pred_region
    _
  $region5: #{conv_gru_cell.1} parent=0 // pred_fallthru
    _
  // Predicated region
  $region6: #{conv_gru_cell.1} parent=0 // pred_check
    _
  $region7: #{conv_gru_cell.1} parent=0 // pred_check_branch
    %14 = sbr.rel (0) target = $region9
  $region8: #{conv_gru_cell.1} parent=0 // pred_region
    _
  $region9: #{conv_gru_cell.1} parent=0 // pred_fallthru
    _
  // Predicated region
  $region10: #{conv_gru_cell.1} parent=0 // pred_check
    _
  $region11: #{conv_gru_cell.1} parent=0 // pred_check_branch
    %16 = sbr.rel (0) target = $region13
  $region12: #{conv_gru_cell.1} parent=0 // pred_region
    _
  $region13: #{conv_gru_cell.1} parent=0 // pred_fallthru
    _
  // Predicated region
  $region14: #{conv_gru_cell.1} parent=0 // pred_check
    _
  $region15: #{conv_gru_cell.1} parent=0 // pred_check_branch
    %18 = sbr.rel (0) target = $region17
  $region16: #{conv_gru_cell.1} parent=0 // pred_region
    _
  $region17: #{conv_gru_cell.1} parent=0 // pred_fallthru
    _
  // Predicated region
  $region18: #{conv_gru_cell.1} parent=0 // pred_check
    _
  $region19: #{conv_gru_cell.1} parent=0 // pred_check_branch
    %20 = sbr.rel (0) target = $region21
  $region20: #{conv_gru_cell.1} parent=0 // pred_region
    _
  $region21: #{conv_gru_cell.1} parent=0 // pred_fallthru
    _
  // Predicated region
  $region22: #{conv_gru_cell.1} parent=0 // pred_check
    _
  $region23: #{conv_gru_cell.1} parent=0 // pred_check_branch
    %22 = sbr.rel (0) target = $region25
  $region24: #{conv_gru_cell.1} parent=0 // pred_region
    _
  $region25: #{conv_gru_cell.1} parent=0 // pred_fallthru
    _
  %v23 = vld [vmem:[%s0] sm:$0xff]
  %v24 = vld [vmem:[%s0 + $0x8] sm:$0xff]
  %v25 = vld [vmem:[%s0 + $0x10] sm:$0xff]
  %v26 = vld [vmem:[%s0 + $0x18] sm:$0xff]
  %v27 = vld [vmem:[%s1] sm:$0xff]
  %v28 = vld [vmem:[%s1 + $0x8] sm:$0xff]
  %v29 = vld [vmem:[%s1 + $0x10] sm:$0xff]
  %v30 = vld [vmem:[%s1 + $0x18] sm:$0xff]
  %v31 = vld [vmem:[%s2] sm:$0xff]
  %v32 = vld [vmem:[%s2 + $0x8] sm:$0xff]
  %v33 = vld [vmem:[%s2 + $0x10] sm:$0xff]
  %v34 = vld [vmem:[%s2 + $0x18] sm:$0xff]
  %v35 = vld [vmem:[%s2 + $0x20] sm:$0x1]
  %v36 = vld [vmem:[%s2 + $0x28] sm:$0x1]
  %v37 = vld [vmem:[%s2 + $0x30] sm:$0x1]
  %v38 = vld [vmem:[%s2 + $0x38] sm:$0x1]
  %39 = vrot.lane.b32.xlu0 %v23, 17
  %v40 = vpop.permute.xlu0 %39
  %41 = vrot.lane.b32.xlu0 %v24, 17
  %v42 = vpop.permute.xlu0 %41
  %43 = vrot.lane.b32.xlu0 %v25, 17
  %v44 = vpop.permute.xlu0 %43
  %45 = vrot.lane.b32.xlu0 %v26, 17
  %v46 = vpop.permute.xlu0 %45
  %v47 = vlaneseq
  %v48 = vand.u32 %v47, 127
  %vm49 = vcmp.lt.s32.totalorder %v48, 17
  %v50 = vsel %vm49, %v44, %v46
  %v51 = vsel %vm49, %v42, %v44
  %v52 = vsel %vm49, %v40, %v42
  %v53 = vsel %vm49, %v46, %v40
  %v54 = vperm.slane %v31, 0
  %v55 = vperm.slane %v32, 0
  %v56 = vperm.slane %v33, 0
  %v57 = vperm.slane %v34, 0
  %v58 = vmul.f32 %v53, %v54
  %v59 = vmul.f32 %v52, %v55
  %v60 = vmul.f32 %v51, %v56
  %v61 = vmul.f32 %v50, %v57
  %62 = vst [vmem:[#allocation2] sm:$0xff] %v58
  %63 = vst [vmem:[#allocation2 + $0x8] sm:$0xff] %v59
  %64 = vst [vmem:[#allocation2 + $0x10] sm:$0xff] %v60
  %65 = vst [vmem:[#allocation2 + $0x18] sm:$0xff] %v61
  %66 = vrot.lane.b32.xlu0 %v27, 17
  %v67 = vpop.permute.xlu0 %66
  %68 = vrot.lane.b32.xlu0 %v28, 17
  %v69 = vpop.permute.xlu0 %68
  %70 = vrot.lane.b32.xlu0 %v29, 17
  %v71 = vpop.permute.xlu0 %70
  %72 = vrot.lane.b32.xlu0 %v30, 17
  %v73 = vpop.permute.xlu0 %72
  %v74 = vsel %vm49, %v71, %v73
  %v75 = vsel %vm49, %v69, %v71
  %v76 = vsel %vm49, %v67, %v69
  %v77 = vsel %vm49, %v73, %v67
  %v78 = vmul.f32 %v77, %v54
  %v79 = vmul.f32 %v76, %v55
  %v80 = vmul.f32 %v75, %v56
  %v81 = vmul.f32 %v74, %v57
  %82 = vst [vmem:[#allocation3] sm:$0xff] %v78
  %83 = vst [vmem:[#allocation3 + $0x8] sm:$0xff] %v79
  %84 = vst [vmem:[#allocation3 + $0x10] sm:$0xff] %v80
  %85 = vst [vmem:[#allocation3 + $0x18] sm:$0xff] %v81
  %86 = vrot.lane.b32.xlu0 %v23, 16
  %v87 = vpop.permute.xlu0 %86
  %88 = vrot.lane.b32.xlu0 %v24, 16
  %v89 = vpop.permute.xlu0 %88
  %90 = vrot.lane.b32.xlu0 %v25, 16
  %v91 = vpop.permute.xlu0 %90
  %92 = vrot.lane.b32.xlu0 %v26, 16
  %v93 = vpop.permute.xlu0 %92
  %vm94 = vcmp.lt.s32.totalorder %v48, 16
  %v95 = vsel %vm94, %v91, %v93
  %v96 = vsel %vm94, %v89, %v91
  %v97 = vsel %vm94, %v87, %v89
  %v98 = vsel %vm94, %v93, %v87
  %v99 = vperm.slane %v31, 1
  %v100 = vperm.slane %v32, 1
  %v101 = vperm.slane %v33, 1
  %v102 = vperm.slane %v34, 1
  %v103 = vmul.f32 %v98, %v99
  %v104 = vmul.f32 %v97, %v100
  %v105 = vmul.f32 %v96, %v101
  %v106 = vmul.f32 %v95, %v102
  %107 = vst [vmem:[#allocation2 + $0x20] sm:$0xff] %v103
  %108 = vst [vmem:[#allocation2 + $0x28] sm:$0xff] %v104
  %109 = vst [vmem:[#allocation2 + $0x30] sm:$0xff] %v105
  %110 = vst [vmem:[#allocation2 + $0x38] sm:$0xff] %v106
  %111 = vrot.lane.b32.xlu0 %v27, 16
  %v112 = vpop.permute.xlu0 %111
  %113 = vrot.lane.b32.xlu0 %v28, 16
  %v114 = vpop.permute.xlu0 %113
  %115 = vrot.lane.b32.xlu0 %v29, 16
  %v116 = vpop.permute.xlu0 %115
  %117 = vrot.lane.b32.xlu0 %v30, 16
  %v118 = vpop.permute.xlu0 %117
  %v119 = vsel %vm94, %v116, %v118
  %v120 = vsel %vm94, %v114, %v116
  %v121 = vsel %vm94, %v112, %v114
  %v122 = vsel %vm94, %v118, %v112
  %v123 = vmul.f32 %v122, %v99
  %v124 = vmul.f32 %v121, %v100
  %v125 = vmul.f32 %v120, %v101
  %v126 = vmul.f32 %v119, %v102
  %127 = vst [vmem:[#allocation3 + $0x20] sm:$0xff] %v123
  %128 = vst [vmem:[#allocation3 + $0x28] sm:$0xff] %v124
  %129 = vst [vmem:[#allocation3 + $0x30] sm:$0xff] %v125
  %130 = vst [vmem:[#allocation3 + $0x38] sm:$0xff] %v126
  %131 = vrot.lane.b32.xlu0 %v23, 15
  %v132 = vpop.permute.xlu0 %131
  %133 = vrot.lane.b32.xlu0 %v24, 15
  %v134 = vpop.permute.xlu0 %133
  %135 = vrot.lane.b32.xlu0 %v25, 15
  %v136 = vpop.permute.xlu0 %135
  %137 = vrot.lane.b32.xlu0 %v26, 15
  %v138 = vpop.permute.xlu0 %137
  %vm139 = vcmp.lt.s32.totalorder %v48, 15
  %v140 = vsel %vm139, %v136, %v138
  %v141 = vsel %vm139, %v134, %v136
  %v142 = vsel %vm139, %v132, %v134
  %v143 = vsel %vm139, %v138, %v132
  %v144 = vperm.slane %v31, 2
  %v145 = vperm.slane %v32, 2
  %v146 = vperm.slane %v33, 2
  %v147 = vperm.slane %v34, 2
  %v148 = vmul.f32 %v143, %v144
  %v149 = vmul.f32 %v142, %v145
  %v150 = vmul.f32 %v141, %v146
  %v151 = vmul.f32 %v140, %v147
  %152 = vst [vmem:[#allocation2 + $0x40] sm:$0xff] %v148
  %153 = vst [vmem:[#allocation2 + $0x48] sm:$0xff] %v149
  %154 = vst [vmem:[#allocation2 + $0x50] sm:$0xff] %v150
  %155 = vst [vmem:[#allocation2 + $0x58] sm:$0xff] %v151
  %156 = vrot.lane.b32.xlu0 %v27, 15
  %v157 = vpop.permute.xlu0 %156
  %158 = vrot.lane.b32.xlu0 %v28, 15
  %v159 = vpop.permute.xlu0 %158
  %160 = vrot.lane.b32.xlu0 %v29, 15
  %v161 = vpop.permute.xlu0 %160
  %162 = vrot.lane.b32.xlu0 %v30, 15
  %v163 = vpop.permute.xlu0 %162
  %v164 = vsel %vm139, %v161, %v163
  %v165 = vsel %vm139, %v159, %v161
  %v166 = vsel %vm139, %v157, %v159
  %v167 = vsel %vm139, %v163, %v157
  %v168 = vmul.f32 %v167, %v144
  %v169 = vmul.f32 %v166, %v145
  %v170 = vmul.f32 %v165, %v146
  %v171 = vmul.f32 %v164, %v147
  %172 = vst [vmem:[#allocation3 + $0x40] sm:$0xff] %v168
  %173 = vst [vmem:[#allocation3 + $0x48] sm:$0xff] %v169
  %174 = vst [vmem:[#allocation3 + $0x50] sm:$0xff] %v170
  %175 = vst [vmem:[#allocation3 + $0x58] sm:$0xff] %v171
  %176 = vrot.lane.b32.xlu0 %v23, 1
  %v177 = vpop.permute.xlu0 %176
  %178 = vrot.lane.b32.xlu0 %v24, 1
  %v179 = vpop.permute.xlu0 %178
  %180 = vrot.lane.b32.xlu0 %v25, 1
  %v181 = vpop.permute.xlu0 %180
  %182 = vrot.lane.b32.xlu0 %v26, 1
  %v183 = vpop.permute.xlu0 %182
  %vm184 = vcmp.lt.s32.totalorder %v48, 1
  %v185 = vsel %vm184, %v181, %v183
  %v186 = vsel %vm184, %v179, %v181
  %v187 = vsel %vm184, %v177, %v179
  %v188 = vsel %vm184, %v183, %v177
  %v189 = vperm.slane %v31, 3
  %v190 = vperm.slane %v32, 3
  %v191 = vperm.slane %v33, 3
  %v192 = vperm.slane %v34, 3
  %v193 = vmul.f32 %v188, %v189
  %v194 = vmul.f32 %v187, %v190
  %v195 = vmul.f32 %v186, %v191
  %v196 = vmul.f32 %v185, %v192
  %197 = vst [vmem:[#allocation2 + $0x60] sm:$0xff] %v193
  %198 = vst [vmem:[#allocation2 + $0x68] sm:$0xff] %v194
  %199 = vst [vmem:[#allocation2 + $0x70] sm:$0xff] %v195
  %200 = vst [vmem:[#allocation2 + $0x78] sm:$0xff] %v196
  %201 = vrot.lane.b32.xlu0 %v27, 1
  %v202 = vpop.permute.xlu0 %201
  %203 = vrot.lane.b32.xlu0 %v28, 1
  %v204 = vpop.permute.xlu0 %203
  %205 = vrot.lane.b32.xlu0 %v29, 1
  %v206 = vpop.permute.xlu0 %205
  %207 = vrot.lane.b32.xlu0 %v30, 1
  %v208 = vpop.permute.xlu0 %207
  %v209 = vsel %vm184, %v206, %v208
  %v210 = vsel %vm184, %v204, %v206
  %v211 = vsel %vm184, %v202, %v204
  %v212 = vsel %vm184, %v208, %v202
  %v213 = vmul.f32 %v212, %v189
  %v214 = vmul.f32 %v211, %v190
  %v215 = vmul.f32 %v210, %v191
  %v216 = vmul.f32 %v209, %v192
  %217 = vst [vmem:[#allocation3 + $0x60] sm:$0xff] %v213
  %218 = vst [vmem:[#allocation3 + $0x68] sm:$0xff] %v214
  %219 = vst [vmem:[#allocation3 + $0x70] sm:$0xff] %v215
  %220 = vst [vmem:[#allocation3 + $0x78] sm:$0xff] %v216
  %v221 = vperm.slane %v31, 4
  %v222 = vperm.slane %v32, 4
  %v223 = vperm.slane %v33, 4
  %v224 = vperm.slane %v34, 4
  %v225 = vmul.f32 %v23, %v221
  %v226 = vmul.f32 %v24, %v222
  %v227 = vmul.f32 %v25, %v223
  %v228 = vmul.f32 %v26, %v224
  %229 = vst [vmem:[#allocation2 + $0x80] sm:$0xff] %v225
  %230 = vst [vmem:[#allocation2 + $0x88] sm:$0xff] %v226
  %231 = vst [vmem:[#allocation2 + $0x90] sm:$0xff] %v227
  %232 = vst [vmem:[#allocation2 + $0x98] sm:$0xff] %v228
  %v233 = vmul.f32 %v27, %v221
  %v234 = vmul.f32 %v28, %v222
  %v235 = vmul.f32 %v29, %v223
  %v236 = vmul.f32 %v30, %v224
  %237 = vst [vmem:[#allocation3 + $0x80] sm:$0xff] %v233
  %238 = vst [vmem:[#allocation3 + $0x88] sm:$0xff] %v234
  %239 = vst [vmem:[#allocation3 + $0x90] sm:$0xff] %v235
  %240 = vst [vmem:[#allocation3 + $0x98] sm:$0xff] %v236
  %241 = vrot.lane.b32.xlu0 %v23, 127
  %v242 = vpop.permute.xlu0 %241
  %243 = vrot.lane.b32.xlu0 %v24, 127
  %v244 = vpop.permute.xlu0 %243
  %245 = vrot.lane.b32.xlu0 %v25, 127
  %v246 = vpop.permute.xlu0 %245
  %247 = vrot.lane.b32.xlu0 %v26, 127
  %v248 = vpop.permute.xlu0 %247
  %vm249 = vcmp.lt.s32.totalorder %v48, 127
  %v250 = vsel %vm249, %v246, %v248
  %v251 = vsel %vm249, %v244, %v246
  %v252 = vsel %vm249, %v242, %v244
  %v253 = vsel %vm249, %v248, %v242
  %v254 = vperm.slane %v31, 5
  %v255 = vperm.slane %v32, 5
  %v256 = vperm.slane %v33, 5
  %v257 = vperm.slane %v34, 5
  %v258 = vmul.f32 %v252, %v254
  %v259 = vmul.f32 %v251, %v255
  %v260 = vmul.f32 %v250, %v256
  %v261 = vmul.f32 %v253, %v257
  %262 = vst [vmem:[#allocation2 + $0xa0] sm:$0xff] %v258
  %263 = vst [vmem:[#allocation2 + $0xa8] sm:$0xff] %v259
  %264 = vst [vmem:[#allocation2 + $0xb0] sm:$0xff] %v260
  %265 = vst [vmem:[#allocation2 + $0xb8] sm:$0xff] %v261
  %266 = vrot.lane.b32.xlu0 %v27, 127
  %v267 = vpop.permute.xlu0 %266
  %268 = vrot.lane.b32.xlu0 %v28, 127
  %v269 = vpop.permute.xlu0 %268
  %270 = vrot.lane.b32.xlu0 %v29, 127
  %v271 = vpop.permute.xlu0 %270
  %272 = vrot.lane.b32.xlu0 %v30, 127
  %v273 = vpop.permute.xlu0 %272
  %v274 = vsel %vm249, %v271, %v273
  %v275 = vsel %vm249, %v269, %v271
  %v276 = vsel %vm249, %v267, %v269
  %v277 = vsel %vm249, %v273, %v267
  %v278 = vmul.f32 %v276, %v254
  %v279 = vmul.f32 %v275, %v255
  %v280 = vmul.f32 %v274, %v256
  %v281 = vmul.f32 %v277, %v257
  %282 = vst [vmem:[#allocation3 + $0xa0] sm:$0xff] %v278
  %283 = vst [vmem:[#allocation3 + $0xa8] sm:$0xff] %v279
  %284 = vst [vmem:[#allocation3 + $0xb0] sm:$0xff] %v280
  %285 = vst [vmem:[#allocation3 + $0xb8] sm:$0xff] %v281
  %286 = vrot.lane.b32.xlu0 %v23, 113
  %v287 = vpop.permute.xlu0 %286
  %288 = vrot.lane.b32.xlu0 %v24, 113
  %v289 = vpop.permute.xlu0 %288
  %290 = vrot.lane.b32.xlu0 %v25, 113
  %v291 = vpop.permute.xlu0 %290
  %292 = vrot.lane.b32.xlu0 %v26, 113
  %v293 = vpop.permute.xlu0 %292
  %vm294 = vcmp.lt.s32.totalorder %v48, 113
  %v295 = vsel %vm294, %v291, %v293
  %v296 = vsel %vm294, %v289, %v291
  %v297 = vsel %vm294, %v287, %v289
  %v298 = vsel %vm294, %v293, %v287
  %v299 = vperm.slane %v31, 6
  %v300 = vperm.slane %v32, 6
  %v301 = vperm.slane %v33, 6
  %v302 = vperm.slane %v34, 6
  %v303 = vmul.f32 %v297, %v299
  %v304 = vmul.f32 %v296, %v300
  %v305 = vmul.f32 %v295, %v301
  %v306 = vmul.f32 %v298, %v302
  %307 = vst [vmem:[#allocation2 + $0xc0] sm:$0xff] %v303
  %308 = vst [vmem:[#allocation2 + $0xc8] sm:$0xff] %v304
  %309 = vst [vmem:[#allocation2 + $0xd0] sm:$0xff] %v305
  %310 = vst [vmem:[#allocation2 + $0xd8] sm:$0xff] %v306
  %311 = vrot.lane.b32.xlu0 %v27, 113
  %v312 = vpop.permute.xlu0 %311
  %313 = vrot.lane.b32.xlu0 %v28, 113
  %v314 = vpop.permute.xlu0 %313
  %315 = vrot.lane.b32.xlu0 %v29, 113
  %v316 = vpop.permute.xlu0 %315
  %317 = vrot.lane.b32.xlu0 %v30, 113
  %v318 = vpop.permute.xlu0 %317
  %v319 = vsel %vm294, %v316, %v318
  %v320 = vsel %vm294, %v314, %v316
  %v321 = vsel %vm294, %v312, %v314
  %v322 = vsel %vm294, %v318, %v312
  %v323 = vmul.f32 %v321, %v299
  %v324 = vmul.f32 %v320, %v300
  %v325 = vmul.f32 %v319, %v301
  %v326 = vmul.f32 %v322, %v302
  %327 = vst [vmem:[#allocation3 + $0xc0] sm:$0xff] %v323
  %328 = vst [vmem:[#allocation3 + $0xc8] sm:$0xff] %v324
  %329 = vst [vmem:[#allocation3 + $0xd0] sm:$0xff] %v325
  %330 = vst [vmem:[#allocation3 + $0xd8] sm:$0xff] %v326
  %331 = vrot.lane.b32.xlu0 %v23, 112
  %v332 = vpop.permute.xlu0 %331
  %333 = vrot.lane.b32.xlu0 %v24, 112
  %v334 = vpop.permute.xlu0 %333
  %335 = vrot.lane.b32.xlu0 %v25, 112
  %v336 = vpop.permute.xlu0 %335
  %337 = vrot.lane.b32.xlu0 %v26, 112
  %v338 = vpop.permute.xlu0 %337
  %vm339 = vcmp.lt.s32.totalorder %v48, 112
  %v340 = vsel %vm339, %v336, %v338
  %v341 = vsel %vm339, %v334, %v336
  %v342 = vsel %vm339, %v332, %v334
  %v343 = vsel %vm339, %v338, %v332
  %v344 = vperm.slane %v31, 7
  %v345 = vperm.slane %v32, 7
  %v346 = vperm.slane %v33, 7
  %v347 = vperm.slane %v34, 7
  %v348 = vmul.f32 %v342, %v344
  %v349 = vmul.f32 %v341, %v345
  %v350 = vmul.f32 %v340, %v346
  %v351 = vmul.f32 %v343, %v347
  %352 = vst [vmem:[#allocation2 + $0xe0] sm:$0xff] %v348
  %353 = vst [vmem:[#allocation2 + $0xe8] sm:$0xff] %v349
  %354 = vst [vmem:[#allocation2 + $0xf0] sm:$0xff] %v350
  %355 = vst [vmem:[#allocation2 + $0xf8] sm:$0xff] %v351
  %356 = vrot.lane.b32.xlu0 %v27, 112
  %v357 = vpop.permute.xlu0 %356
  %358 = vrot.lane.b32.xlu0 %v28, 112
  %v359 = vpop.permute.xlu0 %358
  %360 = vrot.lane.b32.xlu0 %v29, 112
  %v361 = vpop.permute.xlu0 %360
  %362 = vrot.lane.b32.xlu0 %v30, 112
  %v363 = vpop.permute.xlu0 %362
  %v364 = vsel %vm339, %v361, %v363
  %v365 = vsel %vm339, %v359, %v361
  %v366 = vsel %vm339, %v357, %v359
  %v367 = vsel %vm339, %v363, %v357
  %v368 = vmul.f32 %v366, %v344
  %v369 = vmul.f32 %v365, %v345
  %v370 = vmul.f32 %v364, %v346
  %v371 = vmul.f32 %v367, %v347
  %372 = vst [vmem:[#allocation3 + $0xe0] sm:$0xff] %v368
  %373 = vst [vmem:[#allocation3 + $0xe8] sm:$0xff] %v369
  %374 = vst [vmem:[#allocation3 + $0xf0] sm:$0xff] %v370
  %375 = vst [vmem:[#allocation3 + $0xf8] sm:$0xff] %v371
  %376 = vrot.lane.b32.xlu0 %v23, 111
  %v377 = vpop.permute.xlu0 %376
  %378 = vrot.lane.b32.xlu0 %v24, 111
  %v379 = vpop.permute.xlu0 %378
  %380 = vrot.lane.b32.xlu0 %v25, 111
  %v381 = vpop.permute.xlu0 %380
  %382 = vrot.lane.b32.xlu0 %v26, 111
  %v383 = vpop.permute.xlu0 %382
  %vm384 = vcmp.lt.s32.totalorder %v48, 111
  %v385 = vsel %vm384, %v381, %v383
  %v386 = vsel %vm384, %v379, %v381
  %v387 = vsel %vm384, %v377, %v379
  %v388 = vsel %vm384, %v383, %v377
  %v389 = vperm.slane %v35, 0
  %v390 = vperm.slane %v36, 0
  %v391 = vperm.slane %v37, 0
  %v392 = vperm.slane %v38, 0
  %v393 = vmul.f32 %v387, %v389
  %v394 = vmul.f32 %v386, %v390
  %v395 = vmul.f32 %v385, %v391
  %v396 = vmul.f32 %v388, %v392
  %397 = vst [vmem:[#allocation2 + $0x100] sm:$0xff] %v393
  %398 = vst [vmem:[#allocation2 + $0x108] sm:$0xff] %v394
  %399 = vst [vmem:[#allocation2 + $0x110] sm:$0xff] %v395
  %400 = vst [vmem:[#allocation2 + $0x118] sm:$0xff] %v396
  %401 = vrot.lane.b32.xlu0 %v27, 111
  %v402 = vpop.permute.xlu0 %401
  %403 = vrot.lane.b32.xlu0 %v28, 111
  %v404 = vpop.permute.xlu0 %403
  %405 = vrot.lane.b32.xlu0 %v29, 111
  %v406 = vpop.permute.xlu0 %405
  %407 = vrot.lane.b32.xlu0 %v30, 111
  %v408 = vpop.permute.xlu0 %407
  %v409 = vsel %vm384, %v406, %v408
  %v410 = vsel %vm384, %v404, %v406
  %v411 = vsel %vm384, %v402, %v404
  %v412 = vsel %vm384, %v408, %v402
  %v413 = vmul.f32 %v411, %v389
  %v414 = vmul.f32 %v410, %v390
  %v415 = vmul.f32 %v409, %v391
  %v416 = vmul.f32 %v412, %v392
  %417 = vst [vmem:[#allocation3 + $0x100] sm:$0xff] %v413
  %418 = vst [vmem:[#allocation3 + $0x108] sm:$0xff] %v414
  %419 = vst [vmem:[#allocation3 + $0x110] sm:$0xff] %v415
  %420 = vst [vmem:[#allocation3 + $0x118] sm:$0xff] %v416
  %v421 = vld [vmem:[%s3] sm:$0xff]
  %v422 = vld [vmem:[%s3 + $0x8] sm:$0xff]
  %v423 = vld [vmem:[%s3 + $0x10] sm:$0xff]
  %v424 = vld [vmem:[#allocation2] sm:$0xff]
  %v425 = vld [vmem:[#allocation2 + $0x8] sm:$0xff]
  %v426 = vld [vmem:[#allocation2 + $0x10] sm:$0xff]
  %v427 = vld [vmem:[#allocation2 + $0x18] sm:$0xff]
  %v428 = vld [vmem:[#allocation2 + $0x20] sm:$0xff]
  %v429 = vld [vmem:[#allocation2 + $0x28] sm:$0xff]
  %v430 = vld [vmem:[#allocation2 + $0x30] sm:$0xff]
  %v431 = vld [vmem:[#allocation2 + $0x38] sm:$0xff]
  %v432 = vld [vmem:[#allocation2 + $0x40] sm:$0xff]
  %v433 = vld [vmem:[#allocation2 + $0x48] sm:$0xff]
  %v434 = vld [vmem:[#allocation2 + $0x50] sm:$0xff]
  %v435 = vld [vmem:[#allocation2 + $0x58] sm:$0xff]
  %v436 = vld [vmem:[#allocation2 + $0x60] sm:$0xff]
  %v437 = vld [vmem:[#allocation2 + $0x68] sm:$0xff]
  %v438 = vld [vmem:[#allocation2 + $0x70] sm:$0xff]
  %v439 = vld [vmem:[#allocation2 + $0x78] sm:$0xff]
  %v440 = vld [vmem:[#allocation2 + $0x80] sm:$0xff]
  %v441 = vld [vmem:[#allocation2 + $0x88] sm:$0xff]
  %v442 = vld [vmem:[#allocation2 + $0x90] sm:$0xff]
  %v443 = vld [vmem:[#allocation2 + $0x98] sm:$0xff]
  %v444 = vld [vmem:[#allocation2 + $0xa0] sm:$0xff]
  %v445 = vld [vmem:[#allocation2 + $0xa8] sm:$0xff]
  %v446 = vld [vmem:[#allocation2 + $0xb0] sm:$0xff]
  %v447 = vld [vmem:[#allocation2 + $0xb8] sm:$0xff]
  %v448 = vld [vmem:[#allocation2 + $0xc0] sm:$0xff]
  %v449 = vld [vmem:[#allocation2 + $0xc8] sm:$0xff]
  %v450 = vld [vmem:[#allocation2 + $0xd0] sm:$0xff]
  %v451 = vld [vmem:[#allocation2 + $0xd8] sm:$0xff]
  %v452 = vld [vmem:[#allocation2 + $0xe0] sm:$0xff]
  %v453 = vld [vmem:[#allocation2 + $0xe8] sm:$0xff]
  %v454 = vld [vmem:[#allocation2 + $0xf0] sm:$0xff]
  %v455 = vld [vmem:[#allocation2 + $0xf8] sm:$0xff]
  %v456 = vld [vmem:[#allocation2 + $0x100] sm:$0xff]
  %v457 = vld [vmem:[#allocation2 + $0x108] sm:$0xff]
  %v458 = vld [vmem:[#allocation2 + $0x110] sm:$0xff]
  %v459 = vld [vmem:[#allocation2 + $0x118] sm:$0xff]
  %vm460 = vcmask 588800
  %v462 = vsel %vm460, %v421, 0
  %v465 = vsel %vm460, %v422, 0
  %v468 = vsel %vm460, %v423, 0
  %470 = vmatpush.msra.mxu0 0.0
  %471 = vmatpush.msra.mxu0 0.0
  %472 = vmatpush.msra.mxu0 0.0
  %473 = vmatpush.msra.mxu0 0.0
  %474 = vmatpush.msra.mxu0 0.0
  %475 = vmatpush.msra.mxu0 0.0
  %476 = vmatpush.msra.mxu0 0.0
  %477 = vmatpush.msra.mxu0 %v456
  %478 = vmatpush.msra.mxu0 %v452
  %479 = vmatpush.msra.mxu0 %v448
  %480 = vmatpush.msra.mxu0 %v444
  %481 = vmatpush.msra.mxu0 %v440
  %482 = vmatpush.msra.mxu0 %v436
  %483 = vmatpush.msra.mxu0 %v432
  %484 = vmatpush.msra.mxu0 %v428
  %485 = vmatpush.msra.mxu0 %v424
  %486 = vmatmul.f32.gmra.mxu0 %v462
  %v487 = vpop.f32.mrf.mxu0
  %v488 = vadd.f32 0.0, %v487
  %489 = vmatmul.f32.gmra.mxu0 %v465
  %v490 = vpop.f32.mrf.mxu0
  %v491 = vadd.f32 0.0, %v490
  %492 = vmatmul.f32.gmra.mxu0 %v468
  %v493 = vpop.f32.mrf.mxu0
  %v494 = vadd.f32 0.0, %v493
  %495 = vdwg.mxu0
  %496 = vmatpush.msra.mxu0 0.0
  %497 = vmatpush.msra.mxu0 0.0
  %498 = vmatpush.msra.mxu0 0.0
  %499 = vmatpush.msra.mxu0 0.0
  %500 = vmatpush.msra.mxu0 0.0
  %501 = vmatpush.msra.mxu0 0.0
  %502 = vmatpush.msra.mxu0 0.0
  %503 = vmatpush.msra.mxu0 %v457
  %504 = vmatpush.msra.mxu0 %v453
  %505 = vmatpush.msra.mxu0 %v449
  %506 = vmatpush.msra.mxu0 %v445
  %507 = vmatpush.msra.mxu0 %v441
  %508 = vmatpush.msra.mxu0 %v437
  %509 = vmatpush.msra.mxu0 %v433
  %510 = vmatpush.msra.mxu0 %v429
  %511 = vmatpush.msra.mxu0 %v425
  %512 = vmatmul.f32.gmra.mxu0 %v462
  %v513 = vpop.f32.mrf.mxu0
  %v514 = vadd.f32 0.0, %v513
  %515 = vmatmul.f32.gmra.mxu0 %v465
  %v516 = vpop.f32.mrf.mxu0
  %v517 = vadd.f32 0.0, %v516
  %518 = vmatmul.f32.gmra.mxu0 %v468
  %v519 = vpop.f32.mrf.mxu0
  %v520 = vadd.f32 0.0, %v519
  %521 = vdwg.mxu0
  %522 = vmatpush.msra.mxu0 0.0
  %523 = vmatpush.msra.mxu0 0.0
  %524 = vmatpush.msra.mxu0 0.0
  %525 = vmatpush.msra.mxu0 0.0
  %526 = vmatpush.msra.mxu0 0.0
  %527 = vmatpush.msra.mxu0 0.0
  %528 = vmatpush.msra.mxu0 0.0
  %529 = vmatpush.msra.mxu0 %v458
  %530 = vmatpush.msra.mxu0 %v454
  %531 = vmatpush.msra.mxu0 %v450
  %532 = vmatpush.msra.mxu0 %v446
  %533 = vmatpush.msra.mxu0 %v442
  %534 = vmatpush.msra.mxu0 %v438
  %535 = vmatpush.msra.mxu0 %v434
  %536 = vmatpush.msra.mxu0 %v430
  %537 = vmatpush.msra.mxu0 %v426
  %538 = vmatmul.f32.gmra.mxu0 %v462
  %v539 = vpop.f32.mrf.mxu0
  %v540 = vadd.f32 0.0, %v539
  %541 = vmatmul.f32.gmra.mxu0 %v465
  %v542 = vpop.f32.mrf.mxu0
  %v543 = vadd.f32 0.0, %v542
  %544 = vmatmul.f32.gmra.mxu0 %v468
  %v545 = vpop.f32.mrf.mxu0
  %v546 = vadd.f32 0.0, %v545
  %547 = vdwg.mxu0
  %548 = vmatpush.msra.mxu0 0.0
  %549 = vmatpush.msra.mxu0 0.0
  %550 = vmatpush.msra.mxu0 0.0
  %551 = vmatpush.msra.mxu0 0.0
  %552 = vmatpush.msra.mxu0 0.0
  %553 = vmatpush.msra.mxu0 0.0
  %554 = vmatpush.msra.mxu0 0.0
  %555 = vmatpush.msra.mxu0 %v459
  %556 = vmatpush.msra.mxu0 %v455
  %557 = vmatpush.msra.mxu0 %v451
  %558 = vmatpush.msra.mxu0 %v447
  %559 = vmatpush.msra.mxu0 %v443
  %560 = vmatpush.msra.mxu0 %v439
  %561 = vmatpush.msra.mxu0 %v435
  %562 = vmatpush.msra.mxu0 %v431
  %563 = vmatpush.msra.mxu0 %v427
  %564 = vmatmul.f32.gmra.mxu0 %v462
  %v565 = vpop.f32.mrf.mxu0
  %v566 = vadd.f32 0.0, %v565
  %567 = vmatmul.f32.gmra.mxu0 %v465
  %v568 = vpop.f32.mrf.mxu0
  %v569 = vadd.f32 0.0, %v568
  %570 = vmatmul.f32.gmra.mxu0 %v468
  %v571 = vpop.f32.mrf.mxu0
  %v572 = vadd.f32 0.0, %v571
  %573 = vdwg.mxu0
  %v574 = vld [vmem:[%s4] sm:$0xff]
  %v575 = vld [vmem:[%s4 + $0x8] sm:$0xff]
  %v576 = vld [vmem:[#allocation3] sm:$0xff]
  %v577 = vld [vmem:[#allocation3 + $0x8] sm:$0xff]
  %v578 = vld [vmem:[#allocation3 + $0x10] sm:$0xff]
  %v579 = vld [vmem:[#allocation3 + $0x18] sm:$0xff]
  %v580 = vld [vmem:[#allocation3 + $0x20] sm:$0xff]
  %v581 = vld [vmem:[#allocation3 + $0x28] sm:$0xff]
  %v582 = vld [vmem:[#allocation3 + $0x30] sm:$0xff]
  %v583 = vld [vmem:[#allocation3 + $0x38] sm:$0xff]
  %v584 = vld [vmem:[#allocation3 + $0x40] sm:$0xff]
  %v585 = vld [vmem:[#allocation3 + $0x48] sm:$0xff]
  %v586 = vld [vmem:[#allocation3 + $0x50] sm:$0xff]
  %v587 = vld [vmem:[#allocation3 + $0x58] sm:$0xff]
  %v588 = vld [vmem:[#allocation3 + $0x60] sm:$0xff]
  %v589 = vld [vmem:[#allocation3 + $0x68] sm:$0xff]
  %v590 = vld [vmem:[#allocation3 + $0x70] sm:$0xff]
  %v591 = vld [vmem:[#allocation3 + $0x78] sm:$0xff]
  %v592 = vld [vmem:[#allocation3 + $0x80] sm:$0xff]
  %v593 = vld [vmem:[#allocation3 + $0x88] sm:$0xff]
  %v594 = vld [vmem:[#allocation3 + $0x90] sm:$0xff]
  %v595 = vld [vmem:[#allocation3 + $0x98] sm:$0xff]
  %v596 = vld [vmem:[#allocation3 + $0xa0] sm:$0xff]
  %v597 = vld [vmem:[#allocation3 + $0xa8] sm:$0xff]
  %v598 = vld [vmem:[#allocation3 + $0xb0] sm:$0xff]
  %v599 = vld [vmem:[#allocation3 + $0xb8] sm:$0xff]
  %v600 = vld [vmem:[#allocation3 + $0xc0] sm:$0xff]
  %v601 = vld [vmem:[#allocation3 + $0xc8] sm:$0xff]
  %v602 = vld [vmem:[#allocation3 + $0xd0] sm:$0xff]
  %v603 = vld [vmem:[#allocation3 + $0xd8] sm:$0xff]
  %v604 = vld [vmem:[#allocation3 + $0xe0] sm:$0xff]
  %v605 = vld [vmem:[#allocation3 + $0xe8] sm:$0xff]
  %v606 = vld [vmem:[#allocation3 + $0xf0] sm:$0xff]
  %v607 = vld [vmem:[#allocation3 + $0xf8] sm:$0xff]
  %v608 = vld [vmem:[#allocation3 + $0x100] sm:$0xff]
  %v609 = vld [vmem:[#allocation3 + $0x108] sm:$0xff]
  %v610 = vld [vmem:[#allocation3 + $0x110] sm:$0xff]
  %v611 = vld [vmem:[#allocation3 + $0x118] sm:$0xff]
  %v613 = vsel %vm460, %v574, 0
  %v616 = vsel %vm460, %v575, 0
  %618 = vmatpush.msra.mxu0 0.0
  %619 = vmatpush.msra.mxu0 0.0
  %620 = vmatpush.msra.mxu0 0.0
  %621 = vmatpush.msra.mxu0 0.0
  %622 = vmatpush.msra.mxu0 0.0
  %623 = vmatpush.msra.mxu0 0.0
  %624 = vmatpush.msra.mxu0 0.0
  %625 = vmatpush.msra.mxu0 %v608
  %626 = vmatpush.msra.mxu0 %v604
  %627 = vmatpush.msra.mxu0 %v600
  %628 = vmatpush.msra.mxu0 %v596
  %629 = vmatpush.msra.mxu0 %v592
  %630 = vmatpush.msra.mxu0 %v588
  %631 = vmatpush.msra.mxu0 %v584
  %632 = vmatpush.msra.mxu0 %v580
  %633 = vmatpush.msra.mxu0 %v576
  %634 = vmatmul.f32.gmra.mxu0 %v613
  %v635 = vpop.f32.mrf.mxu0
  %v636 = vadd.f32 0.0, %v635
  %637 = vmatmul.f32.gmra.mxu0 %v616
  %v638 = vpop.f32.mrf.mxu0
  %v639 = vadd.f32 0.0, %v638
  %640 = vdwg.mxu0
  %641 = vmatpush.msra.mxu0 0.0
  %642 = vmatpush.msra.mxu0 0.0
  %643 = vmatpush.msra.mxu0 0.0
  %644 = vmatpush.msra.mxu0 0.0
  %645 = vmatpush.msra.mxu0 0.0
  %646 = vmatpush.msra.mxu0 0.0
  %647 = vmatpush.msra.mxu0 0.0
  %648 = vmatpush.msra.mxu0 %v609
  %649 = vmatpush.msra.mxu0 %v605
  %650 = vmatpush.msra.mxu0 %v601
  %651 = vmatpush.msra.mxu0 %v597
  %652 = vmatpush.msra.mxu0 %v593
  %653 = vmatpush.msra.mxu0 %v589
  %654 = vmatpush.msra.mxu0 %v585
  %655 = vmatpush.msra.mxu0 %v581
  %656 = vmatpush.msra.mxu0 %v577
  %657 = vmatmul.f32.gmra.mxu0 %v613
  %v658 = vpop.f32.mrf.mxu0
  %v659 = vadd.f32 0.0, %v658
  %660 = vmatmul.f32.gmra.mxu0 %v616
  %v661 = vpop.f32.mrf.mxu0
  %v662 = vadd.f32 0.0, %v661
  %663 = vdwg.mxu0
  %664 = vmatpush.msra.mxu0 0.0
  %665 = vmatpush.msra.mxu0 0.0
  %666 = vmatpush.msra.mxu0 0.0
  %667 = vmatpush.msra.mxu0 0.0
  %668 = vmatpush.msra.mxu0 0.0
  %669 = vmatpush.msra.mxu0 0.0
  %670 = vmatpush.msra.mxu0 0.0
  %671 = vmatpush.msra.mxu0 %v610
  %672 = vmatpush.msra.mxu0 %v606
  %673 = vmatpush.msra.mxu0 %v602
  %674 = vmatpush.msra.mxu0 %v598
  %675 = vmatpush.msra.mxu0 %v594
  %676 = vmatpush.msra.mxu0 %v590
  %677 = vmatpush.msra.mxu0 %v586
  %678 = vmatpush.msra.mxu0 %v582
  %679 = vmatpush.msra.mxu0 %v578
  %680 = vmatmul.f32.gmra.mxu0 %v613
  %v681 = vpop.f32.mrf.mxu0
  %v682 = vadd.f32 0.0, %v681
  %683 = vmatmul.f32.gmra.mxu0 %v616
  %v684 = vpop.f32.mrf.mxu0
  %v685 = vadd.f32 0.0, %v684
  %686 = vdwg.mxu0
  %687 = vmatpush.msra.mxu0 0.0
  %688 = vmatpush.msra.mxu0 0.0
  %689 = vmatpush.msra.mxu0 0.0
  %690 = vmatpush.msra.mxu0 0.0
  %691 = vmatpush.msra.mxu0 0.0
  %692 = vmatpush.msra.mxu0 0.0
  %693 = vmatpush.msra.mxu0 0.0
  %694 = vmatpush.msra.mxu0 %v611
  %695 = vmatpush.msra.mxu0 %v607
  %696 = vmatpush.msra.mxu0 %v603
  %697 = vmatpush.msra.mxu0 %v599
  %698 = vmatpush.msra.mxu0 %v595
  %699 = vmatpush.msra.mxu0 %v591
  %700 = vmatpush.msra.mxu0 %v587
  %701 = vmatpush.msra.mxu0 %v583
  %702 = vmatpush.msra.mxu0 %v579
  %703 = vmatmul.f32.gmra.mxu0 %v613
  %v704 = vpop.f32.mrf.mxu0
  %v705 = vadd.f32 0.0, %v704
  %706 = vmatmul.f32.gmra.mxu0 %v616
  %v707 = vpop.f32.mrf.mxu0
  %v708 = vadd.f32 0.0, %v707
  %709 = vdwg.mxu0
  %v710 = vadd.f32 %v488, %v636
  %v711 = vadd.f32 %v514, %v659
  %v712 = vadd.f32 %v540, %v682
  %v713 = vadd.f32 %v566, %v705
  %v714 = vadd.f32 %v491, %v639
  %v715 = vadd.f32 %v517, %v662
  %v716 = vadd.f32 %v543, %v685
  %v717 = vadd.f32 %v569, %v708
  %v718 = vxor.u32 %v710, 2147483648
  %v719 = vxor.u32 %v711, 2147483648
  %v720 = vxor.u32 %v712, 2147483648
  %v721 = vxor.u32 %v713, 2147483648
  %v722 = vxor.u32 %v714, 2147483648
  %v723 = vxor.u32 %v715, 2147483648
  %v724 = vxor.u32 %v716, 2147483648
  %v725 = vxor.u32 %v717, 2147483648
  %v726 = vmul.f32 %v718, 1.442695
  %v727 = vpow.pop %v726
  %v728 = vmul.f32 %v719, 1.442695
  %v729 = vpow.pop %v728
  %v730 = vmul.f32 %v720, 1.442695
  %v731 = vpow.pop %v730
  %v732 = vmul.f32 %v721, 1.442695
  %v733 = vpow.pop %v732
  %v734 = vmul.f32 %v722, 1.442695
  %v735 = vpow.pop %v734
  %v736 = vmul.f32 %v723, 1.442695
  %v737 = vpow.pop %v736
  %v738 = vmul.f32 %v724, 1.442695
  %v739 = vpow.pop %v738
  %v740 = vmul.f32 %v725, 1.442695
  %v741 = vpow.pop %v740
  %v742 = vadd.f32 %v727, 1.0
  %v743 = vadd.f32 %v729, 1.0
  %v744 = vadd.f32 %v731, 1.0
  %v745 = vadd.f32 %v733, 1.0
  %v746 = vadd.f32 %v735, 1.0
  %v747 = vadd.f32 %v737, 1.0
  %v748 = vadd.f32 %v739, 1.0
  %v749 = vadd.f32 %v741, 1.0
  %v750 = vrcp.pop %v742
  %v751 = vmul.f32 %v742, %v750
  %v752 = vsub.f32 1.0, %v751
  %v753 = vmul.f32 %v750, %v752
  %v754 = vadd.f32 %v750, %v753
  %vm755 = vweird.f32 %v742
  %vm756 = vweird.f32 %v750
  %vm757 = vmor %vm755, %vm756
  %v758 = vsel %vm757, %v750, %v754
  %v759 = vand.u32 2147483647, %v742
  %vm760 = vcmp.eq.f32.partialorder %v759, 8.507059e+37
  %v761 = vand.u32 %v742, 2147483648
  %v762 = vor.u32 1.1754944e-38, %v761
  %v763 = vsel %vm760, %v762, %v758
  %v764 = vmul.f32 1.0, %v763
  %v765 = vrcp.pop %v743
  %v766 = vmul.f32 %v743, %v765
  %v767 = vsub.f32 1.0, %v766
  %v768 = vmul.f32 %v765, %v767
  %v769 = vadd.f32 %v765, %v768
  %vm770 = vweird.f32 %v743
  %vm771 = vweird.f32 %v765
  %vm772 = vmor %vm770, %vm771
  %v773 = vsel %vm772, %v765, %v769
  %v774 = vand.u32 2147483647, %v743
  %vm775 = vcmp.eq.f32.partialorder %v774, 8.507059e+37
  %v776 = vand.u32 %v743, 2147483648
  %v777 = vor.u32 1.1754944e-38, %v776
  %v778 = vsel %vm775, %v777, %v773
  %v779 = vmul.f32 1.0, %v778
  %v780 = vrcp.pop %v744
  %v781 = vmul.f32 %v744, %v780
  %v782 = vsub.f32 1.0, %v781
  %v783 = vmul.f32 %v780, %v782
  %v784 = vadd.f32 %v780, %v783
  %vm785 = vweird.f32 %v744
  %vm786 = vweird.f32 %v780
  %vm787 = vmor %vm785, %vm786
  %v788 = vsel %vm787, %v780, %v784
  %v789 = vand.u32 2147483647, %v744
  %vm790 = vcmp.eq.f32.partialorder %v789, 8.507059e+37
  %v791 = vand.u32 %v744, 2147483648
  %v792 = vor.u32 1.1754944e-38, %v791
  %v793 = vsel %vm790, %v792, %v788
  %v794 = vmul.f32 1.0, %v793
  %v795 = vrcp.pop %v745
  %v796 = vmul.f32 %v745, %v795
  %v797 = vsub.f32 1.0, %v796
  %v798 = vmul.f32 %v795, %v797
  %v799 = vadd.f32 %v795, %v798
  %vm800 = vweird.f32 %v745
  %vm801 = vweird.f32 %v795
  %vm802 = vmor %vm800, %vm801
  %v803 = vsel %vm802, %v795, %v799
  %v804 = vand.u32 2147483647, %v745
  %vm805 = vcmp.eq.f32.partialorder %v804, 8.507059e+37
  %v806 = vand.u32 %v745, 2147483648
  %v807 = vor.u32 1.1754944e-38, %v806
  %v808 = vsel %vm805, %v807, %v803
  %v809 = vmul.f32 1.0, %v808
  %v810 = vrcp.pop %v746
  %v811 = vmul.f32 %v746, %v810
  %v812 = vsub.f32 1.0, %v811
  %v813 = vmul.f32 %v810, %v812
  %v814 = vadd.f32 %v810, %v813
  %vm815 = vweird.f32 %v746
  %vm816 = vweird.f32 %v810
  %vm817 = vmor %vm815, %vm816
  %v818 = vsel %vm817, %v810, %v814
  %v819 = vand.u32 2147483647, %v746
  %vm820 = vcmp.eq.f32.partialorder %v819, 8.507059e+37
  %v821 = vand.u32 %v746, 2147483648
  %v822 = vor.u32 1.1754944e-38, %v821
  %v823 = vsel %vm820, %v822, %v818
  %v824 = vmul.f32 1.0, %v823
  %v825 = vrcp.pop %v747
  %v826 = vmul.f32 %v747, %v825
  %v827 = vsub.f32 1.0, %v826
  %v828 = vmul.f32 %v825, %v827
  %v829 = vadd.f32 %v825, %v828
  %vm830 = vweird.f32 %v747
  %vm831 = vweird.f32 %v825
  %vm832 = vmor %vm830, %vm831
  %v833 = vsel %vm832, %v825, %v829
  %v834 = vand.u32 2147483647, %v747
  %vm835 = vcmp.eq.f32.partialorder %v834, 8.507059e+37
  %v836 = vand.u32 %v747, 2147483648
  %v837 = vor.u32 1.1754944e-38, %v836
  %v838 = vsel %vm835, %v837, %v833
  %v839 = vmul.f32 1.0, %v838
  %v840 = vrcp.pop %v748
  %v841 = vmul.f32 %v748, %v840
  %v842 = vsub.f32 1.0, %v841
  %v843 = vmul.f32 %v840, %v842
  %v844 = vadd.f32 %v840, %v843
  %vm845 = vweird.f32 %v748
  %vm846 = vweird.f32 %v840
  %vm847 = vmor %vm845, %vm846
  %v848 = vsel %vm847, %v840, %v844
  %v849 = vand.u32 2147483647, %v748
  %vm850 = vcmp.eq.f32.partialorder %v849, 8.507059e+37
  %v851 = vand.u32 %v748, 2147483648
  %v852 = vor.u32 1.1754944e-38, %v851
  %v853 = vsel %vm850, %v852, %v848
  %v854 = vmul.f32 1.0, %v853
  %v855 = vrcp.pop %v749
  %v856 = vmul.f32 %v749, %v855
  %v857 = vsub.f32 1.0, %v856
  %v858 = vmul.f32 %v855, %v857
  %v859 = vadd.f32 %v855, %v858
  %vm860 = vweird.f32 %v749
  %vm861 = vweird.f32 %v855
  %vm862 = vmor %vm860, %vm861
  %v863 = vsel %vm862, %v855, %v859
  %v864 = vand.u32 2147483647, %v749
  %vm865 = vcmp.eq.f32.partialorder %v864, 8.507059e+37
  %v866 = vand.u32 %v749, 2147483648
  %v867 = vor.u32 1.1754944e-38, %v866
  %v868 = vsel %vm865, %v867, %v863
  %v869 = vmul.f32 1.0, %v868
  %870 = vrot.lane.b32.xlu0 %v764, 17
  %v871 = vpop.permute.xlu0 %870
  %872 = vrot.lane.b32.xlu0 %v779, 17
  %v873 = vpop.permute.xlu0 %872
  %874 = vrot.lane.b32.xlu0 %v794, 17
  %v875 = vpop.permute.xlu0 %874
  %876 = vrot.lane.b32.xlu0 %v809, 17
  %v877 = vpop.permute.xlu0 %876
  %v878 = vsel %vm49, %v875, %v877
  %v879 = vsel %vm49, %v873, %v875
  %v880 = vsel %vm49, %v871, %v873
  %v881 = vsel %vm49, %v877, %v871
  %v882 = vld [vmem:[#allocation3] sm:$0xff]
  %v883 = vld [vmem:[#allocation3 + $0x8] sm:$0xff]
  %v884 = vld [vmem:[#allocation3 + $0x10] sm:$0xff]
  %v885 = vld [vmem:[#allocation3 + $0x18] sm:$0xff]
  %v886 = vmul.f32 %v881, %v882
  %v887 = vmul.f32 %v880, %v883
  %v888 = vmul.f32 %v879, %v884
  %v889 = vmul.f32 %v878, %v885
  %890 = vst [vmem:[#allocation3] sm:$0xff] %v886
  %891 = vst [vmem:[#allocation3 + $0x8] sm:$0xff] %v887
  %892 = vst [vmem:[#allocation3 + $0x10] sm:$0xff] %v888
  %893 = vst [vmem:[#allocation3 + $0x18] sm:$0xff] %v889
  %894 = vrot.lane.b32.xlu0 %v764, 16
  %v895 = vpop.permute.xlu0 %894
  %896 = vrot.lane.b32.xlu0 %v779, 16
  %v897 = vpop.permute.xlu0 %896
  %898 = vrot.lane.b32.xlu0 %v794, 16
  %v899 = vpop.permute.xlu0 %898
  %900 = vrot.lane.b32.xlu0 %v809, 16
  %v901 = vpop.permute.xlu0 %900
  %v902 = vsel %vm94, %v899, %v901
  %v903 = vsel %vm94, %v897, %v899
  %v904 = vsel %vm94, %v895, %v897
  %v905 = vsel %vm94, %v901, %v895
  %v906 = vld [vmem:[#allocation3 + $0x20] sm:$0xff]
  %v907 = vld [vmem:[#allocation3 + $0x28] sm:$0xff]
  %v908 = vld [vmem:[#allocation3 + $0x30] sm:$0xff]
  %v909 = vld [vmem:[#allocation3 + $0x38] sm:$0xff]
  %v910 = vmul.f32 %v905, %v906
  %v911 = vmul.f32 %v904, %v907
  %v912 = vmul.f32 %v903, %v908
  %v913 = vmul.f32 %v902, %v909
  %914 = vst [vmem:[#allocation3 + $0x20] sm:$0xff] %v910
  %915 = vst [vmem:[#allocation3 + $0x28] sm:$0xff] %v911
  %916 = vst [vmem:[#allocation3 + $0x30] sm:$0xff] %v912
  %917 = vst [vmem:[#allocation3 + $0x38] sm:$0xff] %v913
  %918 = vrot.lane.b32.xlu0 %v764, 15
  %v919 = vpop.permute.xlu0 %918
  %920 = vrot.lane.b32.xlu0 %v779, 15
  %v921 = vpop.permute.xlu0 %920
  %922 = vrot.lane.b32.xlu0 %v794, 15
  %v923 = vpop.permute.xlu0 %922
  %924 = vrot.lane.b32.xlu0 %v809, 15
  %v925 = vpop.permute.xlu0 %924
  %v926 = vsel %vm139, %v923, %v925
  %v927 = vsel %vm139, %v921, %v923
  %v928 = vsel %vm139, %v919, %v921
  %v929 = vsel %vm139, %v925, %v919
  %v930 = vld [vmem:[#allocation3 + $0x40] sm:$0xff]
  %v931 = vld [vmem:[#allocation3 + $0x48] sm:$0xff]
  %v932 = vld [vmem:[#allocation3 + $0x50] sm:$0xff]
  %v933 = vld [vmem:[#allocation3 + $0x58] sm:$0xff]
  %v934 = vmul.f32 %v929, %v930
  %v935 = vmul.f32 %v928, %v931
  %v936 = vmul.f32 %v927, %v932
  %v937 = vmul.f32 %v926, %v933
  %938 = vst [vmem:[#allocation3 + $0x40] sm:$0xff] %v934
  %939 = vst [vmem:[#allocation3 + $0x48] sm:$0xff] %v935
  %940 = vst [vmem:[#allocation3 + $0x50] sm:$0xff] %v936
  %941 = vst [vmem:[#allocation3 + $0x58] sm:$0xff] %v937
  %942 = vrot.lane.b32.xlu0 %v764, 1
  %v943 = vpop.permute.xlu0 %942
  %944 = vrot.lane.b32.xlu0 %v779, 1
  %v945 = vpop.permute.xlu0 %944
  %946 = vrot.lane.b32.xlu0 %v794, 1
  %v947 = vpop.permute.xlu0 %946
  %948 = vrot.lane.b32.xlu0 %v809, 1
  %v949 = vpop.permute.xlu0 %948
  %v950 = vsel %vm184, %v947, %v949
  %v951 = vsel %vm184, %v945, %v947
  %v952 = vsel %vm184, %v943, %v945
  %v953 = vsel %vm184, %v949, %v943
  %v954 = vld [vmem:[#allocation3 + $0x60] sm:$0xff]
  %v955 = vld [vmem:[#allocation3 + $0x68] sm:$0xff]
  %v956 = vld [vmem:[#allocation3 + $0x70] sm:$0xff]
  %v957 = vld [vmem:[#allocation3 + $0x78] sm:$0xff]
  %v958 = vmul.f32 %v953, %v954
  %v959 = vmul.f32 %v952, %v955
  %v960 = vmul.f32 %v951, %v956
  %v961 = vmul.f32 %v950, %v957
  %962 = vst [vmem:[#allocation3 + $0x60] sm:$0xff] %v958
  %963 = vst [vmem:[#allocation3 + $0x68] sm:$0xff] %v959
  %964 = vst [vmem:[#allocation3 + $0x70] sm:$0xff] %v960
  %965 = vst [vmem:[#allocation3 + $0x78] sm:$0xff] %v961
  %v966 = vld [vmem:[#allocation3 + $0x80] sm:$0xff]
  %v967 = vld [vmem:[#allocation3 + $0x88] sm:$0xff]
  %v968 = vld [vmem:[#allocation3 + $0x90] sm:$0xff]
  %v969 = vld [vmem:[#allocation3 + $0x98] sm:$0xff]
  %v970 = vmul.f32 %v764, %v966
  %v971 = vmul.f32 %v779, %v967
  %v972 = vmul.f32 %v794, %v968
  %v973 = vmul.f32 %v809, %v969
  %974 = vst [vmem:[#allocation3 + $0x80] sm:$0xff] %v970
  %975 = vst [vmem:[#allocation3 + $0x88] sm:$0xff] %v971
  %976 = vst [vmem:[#allocation3 + $0x90] sm:$0xff] %v972
  %977 = vst [vmem:[#allocation3 + $0x98] sm:$0xff] %v973
  %978 = vrot.lane.b32.xlu0 %v764, 127
  %v979 = vpop.permute.xlu0 %978
  %980 = vrot.lane.b32.xlu0 %v779, 127
  %v981 = vpop.permute.xlu0 %980
  %982 = vrot.lane.b32.xlu0 %v794, 127
  %v983 = vpop.permute.xlu0 %982
  %984 = vrot.lane.b32.xlu0 %v809, 127
  %v985 = vpop.permute.xlu0 %984
  %v986 = vsel %vm249, %v983, %v985
  %v987 = vsel %vm249, %v981, %v983
  %v988 = vsel %vm249, %v979, %v981
  %v989 = vsel %vm249, %v985, %v979
  %v990 = vld [vmem:[#allocation3 + $0xa0] sm:$0xff]
  %v991 = vld [vmem:[#allocation3 + $0xa8] sm:$0xff]
  %v992 = vld [vmem:[#allocation3 + $0xb0] sm:$0xff]
  %v993 = vld [vmem:[#allocation3 + $0xb8] sm:$0xff]
  %v994 = vmul.f32 %v988, %v990
  %v995 = vmul.f32 %v987, %v991
  %v996 = vmul.f32 %v986, %v992
  %v997 = vmul.f32 %v989, %v993
  %998 = vst [vmem:[#allocation3 + $0xa0] sm:$0xff] %v994
  %999 = vst [vmem:[#allocation3 + $0xa8] sm:$0xff] %v995
  %1000 = vst [vmem:[#allocation3 + $0xb0] sm:$0xff] %v996
  %1001 = vst [vmem:[#allocation3 + $0xb8] sm:$0xff] %v997
  %1002 = vrot.lane.b32.xlu0 %v764, 113
  %v1003 = vpop.permute.xlu0 %1002
  %1004 = vrot.lane.b32.xlu0 %v779, 113
  %v1005 = vpop.permute.xlu0 %1004
  %1006 = vrot.lane.b32.xlu0 %v794, 113
  %v1007 = vpop.permute.xlu0 %1006
  %1008 = vrot.lane.b32.xlu0 %v809, 113
  %v1009 = vpop.permute.xlu0 %1008
  %v1010 = vsel %vm294, %v1007, %v1009
  %v1011 = vsel %vm294, %v1005, %v1007
  %v1012 = vsel %vm294, %v1003, %v1005
  %v1013 = vsel %vm294, %v1009, %v1003
  %v1014 = vld [vmem:[#allocation3 + $0xc0] sm:$0xff]
  %v1015 = vld [vmem:[#allocation3 + $0xc8] sm:$0xff]
  %v1016 = vld [vmem:[#allocation3 + $0xd0] sm:$0xff]
  %v1017 = vld [vmem:[#allocation3 + $0xd8] sm:$0xff]
  %v1018 = vmul.f32 %v1012, %v1014
  %v1019 = vmul.f32 %v1011, %v1015
  %v1020 = vmul.f32 %v1010, %v1016
  %v1021 = vmul.f32 %v1013, %v1017
  %1022 = vst [vmem:[#allocation3 + $0xc0] sm:$0xff] %v1018
  %1023 = vst [vmem:[#allocation3 + $0xc8] sm:$0xff] %v1019
  %1024 = vst [vmem:[#allocation3 + $0xd0] sm:$0xff] %v1020
  %1025 = vst [vmem:[#allocation3 + $0xd8] sm:$0xff] %v1021
  %1026 = vrot.lane.b32.xlu0 %v764, 112
  %v1027 = vpop.permute.xlu0 %1026
  %1028 = vrot.lane.b32.xlu0 %v779, 112
  %v1029 = vpop.permute.xlu0 %1028
  %1030 = vrot.lane.b32.xlu0 %v794, 112
  %v1031 = vpop.permute.xlu0 %1030
  %1032 = vrot.lane.b32.xlu0 %v809, 112
  %v1033 = vpop.permute.xlu0 %1032
  %v1034 = vsel %vm339, %v1031, %v1033
  %v1035 = vsel %vm339, %v1029, %v1031
  %v1036 = vsel %vm339, %v1027, %v1029
  %v1037 = vsel %vm339, %v1033, %v1027
  %v1038 = vld [vmem:[#allocation3 + $0xe0] sm:$0xff]
  %v1039 = vld [vmem:[#allocation3 + $0xe8] sm:$0xff]
  %v1040 = vld [vmem:[#allocation3 + $0xf0] sm:$0xff]
  %v1041 = vld [vmem:[#allocation3 + $0xf8] sm:$0xff]
  %v1042 = vmul.f32 %v1036, %v1038
  %v1043 = vmul.f32 %v1035, %v1039
  %v1044 = vmul.f32 %v1034, %v1040
  %v1045 = vmul.f32 %v1037, %v1041
  %1046 = vst [vmem:[#allocation3 + $0xe0] sm:$0xff] %v1042
  %1047 = vst [vmem:[#allocation3 + $0xe8] sm:$0xff] %v1043
  %1048 = vst [vmem:[#allocation3 + $0xf0] sm:$0xff] %v1044
  %1049 = vst [vmem:[#allocation3 + $0xf8] sm:$0xff] %v1045
  %1050 = vrot.lane.b32.xlu0 %v764, 111
  %v1051 = vpop.permute.xlu0 %1050
  %1052 = vrot.lane.b32.xlu0 %v779, 111
  %v1053 = vpop.permute.xlu0 %1052
  %1054 = vrot.lane.b32.xlu0 %v794, 111
  %v1055 = vpop.permute.xlu0 %1054
  %1056 = vrot.lane.b32.xlu0 %v809, 111
  %v1057 = vpop.permute.xlu0 %1056
  %v1058 = vsel %vm384, %v1055, %v1057
  %v1059 = vsel %vm384, %v1053, %v1055
  %v1060 = vsel %vm384, %v1051, %v1053
  %v1061 = vsel %vm384, %v1057, %v1051
  %v1062 = vld [vmem:[#allocation3 + $0x100] sm:$0xff]
  %v1063 = vld [vmem:[#allocation3 + $0x108] sm:$0xff]
  %v1064 = vld [vmem:[#allocation3 + $0x110] sm:$0xff]
  %v1065 = vld [vmem:[#allocation3 + $0x118] sm:$0xff]
  %v1066 = vmul.f32 %v1060, %v1062
  %v1067 = vmul.f32 %v1059, %v1063
  %v1068 = vmul.f32 %v1058, %v1064
  %v1069 = vmul.f32 %v1061, %v1065
  %1070 = vst [vmem:[#allocation3 + $0x100] sm:$0xff] %v1066
  %1071 = vst [vmem:[#allocation3 + $0x108] sm:$0xff] %v1067
  %1072 = vst [vmem:[#allocation3 + $0x110] sm:$0xff] %v1068
  %1073 = vst [vmem:[#allocation3 + $0x118] sm:$0xff] %v1069
  %v1074 = vld [vmem:[%s5] sm:$0xff]
  %v1075 = vld [vmem:[#allocation3] sm:$0xff]
  %v1076 = vld [vmem:[#allocation3 + $0x8] sm:$0xff]
  %v1077 = vld [vmem:[#allocation3 + $0x10] sm:$0xff]
  %v1078 = vld [vmem:[#allocation3 + $0x18] sm:$0xff]
  %v1079 = vld [vmem:[#allocation3 + $0x20] sm:$0xff]
  %v1080 = vld [vmem:[#allocation3 + $0x28] sm:$0xff]
  %v1081 = vld [vmem:[#allocation3 + $0x30] sm:$0xff]
  %v1082 = vld [vmem:[#allocation3 + $0x38] sm:$0xff]
  %v1083 = vld [vmem:[#allocation3 + $0x40] sm:$0xff]
  %v1084 = vld [vmem:[#allocation3 + $0x48] sm:$0xff]
  %v1085 = vld [vmem:[#allocation3 + $0x50] sm:$0xff]
  %v1086 = vld [vmem:[#allocation3 + $0x58] sm:$0xff]
  %v1087 = vld [vmem:[#allocation3 + $0x60] sm:$0xff]
  %v1088 = vld [vmem:[#allocation3 + $0x68] sm:$0xff]
  %v1089 = vld [vmem:[#allocation3 + $0x70] sm:$0xff]
  %v1090 = vld [vmem:[#allocation3 + $0x78] sm:$0xff]
  %v1091 = vld [vmem:[#allocation3 + $0x80] sm:$0xff]
  %v1092 = vld [vmem:[#allocation3 + $0x88] sm:$0xff]
  %v1093 = vld [vmem:[#allocation3 + $0x90] sm:$0xff]
  %v1094 = vld [vmem:[#allocation3 + $0x98] sm:$0xff]
  %v1095 = vld [vmem:[#allocation3 + $0xa0] sm:$0xff]
  %v1096 = vld [vmem:[#allocation3 + $0xa8] sm:$0xff]
  %v1097 = vld [vmem:[#allocation3 + $0xb0] sm:$0xff]
  %v1098 = vld [vmem:[#allocation3 + $0xb8] sm:$0xff]
  %v1099 = vld [vmem:[#allocation3 + $0xc0] sm:$0xff]
  %v1100 = vld [vmem:[#allocation3 + $0xc8] sm:$0xff]
  %v1101 = vld [vmem:[#allocation3 + $0xd0] sm:$0xff]
  %v1102 = vld [vmem:[#allocation3 + $0xd8] sm:$0xff]
  %v1103 = vld [vmem:[#allocation3 + $0xe0] sm:$0xff]
  %v1104 = vld [vmem:[#allocation3 + $0xe8] sm:$0xff]
  %v1105 = vld [vmem:[#allocation3 + $0xf0] sm:$0xff]
  %v1106 = vld [vmem:[#allocation3 + $0xf8] sm:$0xff]
  %v1107 = vld [vmem:[#allocation3 + $0x100] sm:$0xff]
  %v1108 = vld [vmem:[#allocation3 + $0x108] sm:$0xff]
  %v1109 = vld [vmem:[#allocation3 + $0x110] sm:$0xff]
  %v1110 = vld [vmem:[#allocation3 + $0x118] sm:$0xff]
  %v1112 = vsel %vm460, %v1074, 0
  %1114 = vmatpush.msra.mxu0 0.0
  %1115 = vmatpush.msra.mxu0 0.0
  %1116 = vmatpush.msra.mxu0 0.0
  %1117 = vmatpush.msra.mxu0 0.0
  %1118 = vmatpush.msra.mxu0 0.0
  %1119 = vmatpush.msra.mxu0 0.0
  %1120 = vmatpush.msra.mxu0 0.0
  %1121 = vmatpush.msra.mxu0 %v1107
  %1122 = vmatpush.msra.mxu0 %v1103
  %1123 = vmatpush.msra.mxu0 %v1099
  %1124 = vmatpush.msra.mxu0 %v1095
  %1125 = vmatpush.msra.mxu0 %v1091
  %1126 = vmatpush.msra.mxu0 %v1087
  %1127 = vmatpush.msra.mxu0 %v1083
  %1128 = vmatpush.msra.mxu0 %v1079
  %1129 = vmatpush.msra.mxu0 %v1075
  %1130 = vmatmul.f32.gmra.mxu0 %v1112
  %v1131 = vpop.f32.mrf.mxu0
  %v1132 = vadd.f32 0.0, %v1131
  %1133 = vdwg.mxu0
  %1134 = vmatpush.msra.mxu0 0.0
  %1135 = vmatpush.msra.mxu0 0.0
  %1136 = vmatpush.msra.mxu0 0.0
  %1137 = vmatpush.msra.mxu0 0.0
  %1138 = vmatpush.msra.mxu0 0.0
  %1139 = vmatpush.msra.mxu0 0.0
  %1140 = vmatpush.msra.mxu0 0.0
  %1141 = vmatpush.msra.mxu0 %v1108
  %1142 = vmatpush.msra.mxu0 %v1104
  %1143 = vmatpush.msra.mxu0 %v1100
  %1144 = vmatpush.msra.mxu0 %v1096
  %1145 = vmatpush.msra.mxu0 %v1092
  %1146 = vmatpush.msra.mxu0 %v1088
  %1147 = vmatpush.msra.mxu0 %v1084
  %1148 = vmatpush.msra.mxu0 %v1080
  %1149 = vmatpush.msra.mxu0 %v1076
  %1150 = vmatmul.f32.gmra.mxu0 %v1112
  %v1151 = vpop.f32.mrf.mxu0
  %v1152 = vadd.f32 0.0, %v1151
  %1153 = vdwg.mxu0
  %1154 = vmatpush.msra.mxu0 0.0
  %1155 = vmatpush.msra.mxu0 0.0
  %1156 = vmatpush.msra.mxu0 0.0
  %1157 = vmatpush.msra.mxu0 0.0
  %1158 = vmatpush.msra.mxu0 0.0
  %1159 = vmatpush.msra.mxu0 0.0
  %1160 = vmatpush.msra.mxu0 0.0
  %1161 = vmatpush.msra.mxu0 %v1109
  %1162 = vmatpush.msra.mxu0 %v1105
  %1163 = vmatpush.msra.mxu0 %v1101
  %1164 = vmatpush.msra.mxu0 %v1097
  %1165 = vmatpush.msra.mxu0 %v1093
  %1166 = vmatpush.msra.mxu0 %v1089
  %1167 = vmatpush.msra.mxu0 %v1085
  %1168 = vmatpush.msra.mxu0 %v1081
  %1169 = vmatpush.msra.mxu0 %v1077
  %1170 = vmatmul.f32.gmra.mxu0 %v1112
  %v1171 = vpop.f32.mrf.mxu0
  %v1172 = vadd.f32 0.0, %v1171
  %1173 = vdwg.mxu0
  %1174 = vmatpush.msra.mxu0 0.0
  %1175 = vmatpush.msra.mxu0 0.0
  %1176 = vmatpush.msra.mxu0 0.0
  %1177 = vmatpush.msra.mxu0 0.0
  %1178 = vmatpush.msra.mxu0 0.0
  %1179 = vmatpush.msra.mxu0 0.0
  %1180 = vmatpush.msra.mxu0 0.0
  %1181 = vmatpush.msra.mxu0 %v1110
  %1182 = vmatpush.msra.mxu0 %v1106
  %1183 = vmatpush.msra.mxu0 %v1102
  %1184 = vmatpush.msra.mxu0 %v1098
  %1185 = vmatpush.msra.mxu0 %v1094
  %1186 = vmatpush.msra.mxu0 %v1090
  %1187 = vmatpush.msra.mxu0 %v1086
  %1188 = vmatpush.msra.mxu0 %v1082
  %1189 = vmatpush.msra.mxu0 %v1078
  %1190 = vmatmul.f32.gmra.mxu0 %v1112
  %v1191 = vpop.f32.mrf.mxu0
  %v1192 = vadd.f32 0.0, %v1191
  %1193 = vdwg.mxu0
  %v1194 = vadd.f32 %v494, %v1132
  %v1195 = vadd.f32 %v520, %v1152
  %v1196 = vadd.f32 %v546, %v1172
  %v1197 = vadd.f32 %v572, %v1192
  %v1198 = vtanh.pop %v1194
  %v1199 = vtanh.pop %v1195
  %v1200 = vtanh.pop %v1196
  %v1201 = vtanh.pop %v1197
  %v1202 = vmul.f32 %v824, %v1198
  %v1203 = vmul.f32 %v839, %v1199
  %v1204 = vmul.f32 %v854, %v1200
  %v1205 = vmul.f32 %v869, %v1201
  %v1206 = vsub.f32 1.0, %v824
  %v1207 = vsub.f32 1.0, %v839
  %v1208 = vsub.f32 1.0, %v854
  %v1209 = vsub.f32 1.0, %v869
  %v1210 = vmul.f32 %v1206, %v27
  %v1211 = vmul.f32 %v1207, %v28
  %v1212 = vmul.f32 %v1208, %v29
  %v1213 = vmul.f32 %v1209, %v30
  %v1214 = vadd.f32 %v1202, %v1210
  %v1215 = vadd.f32 %v1203, %v1211
  %v1216 = vadd.f32 %v1204, %v1212
  %v1217 = vadd.f32 %v1205, %v1213
  %1218 = vst [vmem:[%s6] sm:$0xff] %v1214
  %1219 = vst [vmem:[%s6 + $0x8] sm:$0xff] %v1215
  %1220 = vst [vmem:[%s6 + $0x10] sm:$0xff] %v1216
  %1221 = vst [vmem:[%s6 + $0x18] sm:$0xff] %v1217
  // Predicated region
  $region26: #{conv_gru_cell.1} parent=0 // pred_check
    _
  $region27: #{conv_gru_cell.1} parent=0 // pred_check_branch
    %1223 = sbr.rel (0) target = $region29
  $region28: #{conv_gru_cell.1} parent=0 // pred_region
    _
  $region29: #{conv_gru_cell.1} parent=0 // pred_fallthru
    _
  // Predicated region
  $region30: #{conv_gru_cell.1} parent=0 // pred_check
    _
  $region31: #{conv_gru_cell.1} parent=0 // pred_check_branch
    %1225 = sbr.rel (0) target = $region33
  $region32: #{conv_gru_cell.1} parent=0 // pred_region
    _
  $region33: #{conv_gru_cell.1} parent=0 // pred_fallthru
    _

</llo_original>
